<compile_context>
chip_gen: v7x
topology: tpu7x:2x2x1
jax: 0.10.0
libtpu: 0.0.40
codegen_flags: <defaults>
</compile_context>

<pallas_src>
import math

import jax
import jax.numpy as jnp
from jax import lax
from jax.experimental import pallas as pl
from jax.experimental.pallas import tpu as pltpu


def _gelu_exact(x):
    # PyTorch nn.GELU() default: 0.5 * x * (1 + erf(x / sqrt(2)))
    return 0.5 * x * (1.0 + lax.erf(x * (1.0 / math.sqrt(2.0))))


def mlp_kernel(x_ref, w0_ref, b0_ref, w1_ref, b1_ref, w2_ref, b2_ref, o_ref):
    """Fused 3-layer MLP: Linear -> GELU -> Linear -> GELU -> Linear.

    Weights arrive pre-transposed as [in, out], so each layer is a plain
    x @ W (no in-kernel transpose).
    """
    x = x_ref[...].astype(jnp.float32)

    h = jnp.dot(x, w0_ref[...], preferred_element_type=jnp.float32) + b0_ref[...]
    h = _gelu_exact(h)

    h = jnp.dot(h, w1_ref[...], preferred_element_type=jnp.float32) + b1_ref[...]
    h = _gelu_exact(h)

    out = jnp.dot(h, w2_ref[...], preferred_element_type=jnp.float32) + b2_ref[...]
    o_ref[...] = out.astype(o_ref.dtype)


def nn_mlp_forward(x, params, *, batch_tile=512):
    """Run the fused MLP Pallas kernel.

    x: [B, layer_info[0]] float32
    params: list of (W, b) with W: [out, in] (PyTorch layout), b: [1, out]
    """
    (w0, b0), (w1, b1), (w2, b2) = params
    B, d_in = x.shape
    d_out = w2.shape[0]

    # Pre-transpose weights once (trace-time layout plumbing, outside the kernel).
    w0t, w1t, w2t = w0.T, w1.T, w2.T  # [in, out]

    # Pad the batch up to a multiple of batch_tile; extra rows are dropped at the end.
    n_tiles = pl.cdiv(B, batch_tile)
    Bp = n_tiles * batch_tile
    if Bp != B:
        x_in = jnp.zeros((Bp, d_in), x.dtype).at[:B, :].set(x)
    else:
        x_in = x

    grid = (n_tiles,)

    # Advisory cost estimate for the XLA scheduler.
    flops = 2 * Bp * (w0.shape[0] * w0.shape[1]
                      + w1.shape[0] * w1.shape[1]
                      + w2.shape[0] * w2.shape[1])
    transcendentals = Bp * (w0.shape[0] + w1.shape[0])  # one erf per hidden activation
    bytes_accessed = (Bp * (d_in + d_out) * 4
                      + sum(w.size * 4 + b.size * 4 for w, b in params))
    cost = pl.CostEstimate(flops=flops,
                           transcendentals=transcendentals,
                           bytes_accessed=bytes_accessed)

    # Weights/biases: full-array blocks with a constant index_map -> stay
    # VMEM-resident, no re-DMA across grid steps. They are a few vregs each;
    # no point tiling them.
    def full_spec(arr):
        nd = arr.ndim
        return pl.BlockSpec(arr.shape, lambda i, _nd=nd: (0,) * _nd)

    out = pl.pallas_call(
        mlp_kernel,
        out_shape=jax.ShapeDtypeStruct((Bp, d_out), jnp.float32),
        grid=grid,
        in_specs=[
            pl.BlockSpec((batch_tile, d_in), lambda i: (i, 0)),
            full_spec(w0t), full_spec(b0),
            full_spec(w1t), full_spec(b1),
            full_spec(w2t), full_spec(b2),
        ],
        out_specs=pl.BlockSpec((batch_tile, d_out), lambda i: (i, 0)),
        compiler_params=pltpu.CompilerParams(
            dimension_semantics=("parallel",),  # shards the grid across TCs on v7x
        ),
        cost_estimate=cost,
    )(x_in, w0t, b0, w1t, b1, w2t, b2)

    return out[:B, :] if Bp != B else out


def init_params(key, layer_info):
    """Deterministic init mimicking nn.Linear default (uniform +/- 1/sqrt(fan_in))."""
    params = []
    for i in range(len(layer_info) - 1):
        fan_in, fan_out = layer_info[i], layer_info[i + 1]
        key, kw, kb = jax.random.split(key, 3)
        bound = 1.0 / math.sqrt(fan_in)
        w = jax.random.uniform(kw, (fan_out, fan_in), jnp.float32, -bound, bound)
        b = jax.random.uniform(kb, (1, fan_out), jnp.float32, -bound, bound)
        params.append((w, b))
    return params


def reference_forward(x, params):
    """Pure-JAX reference of the PyTorch module (for sanity check)."""
    n = len(params)
    h = x
    for i, (w, b) in enumerate(params):
        h = h @ w.T + b
        if i < n - 1:
            h = _gelu_exact(h)
    return h


if __name__ == "__main__":
    # layer_info = [16, 32, 32, 8] -> Linear(16,32) GELU Linear(32,32) GELU Linear(32,8)
    layer_info = [16, 32, 32, 8]
    batch = 300  # deliberately NOT a multiple of batch_tile -> exercises padding path

    key = jax.random.PRNGKey(0)
    key, kx = jax.random.split(key)
    x = jax.random.normal(kx, (batch, layer_info[0]), jnp.float32)

    params = init_params(key, layer_info)

    out = nn_mlp_forward(x, params, batch_tile=512)
    out = jax.block_until_ready(out)

    ref = reference_forward(x, params)
    assert out.shape == (batch, layer_info[-1])
    assert jnp.allclose(out, ref, atol=1e-5, rtol=1e-5)

    print("KERNEL_OK")
</pallas_src>

<mosaic_0001>
module attributes {stable_mosaic.version = 11 : i64} {
  func.func @mlp_kernel(%arg0: i32, %arg1: memref<512x16xf32, #tpu.memory_space<vmem>>, %arg2: memref<16x32xf32, #tpu.memory_space<vmem>>, %arg3: memref<1x32xf32, #tpu.memory_space<vmem>>, %arg4: memref<32x32xf32, #tpu.memory_space<vmem>>, %arg5: memref<1x32xf32, #tpu.memory_space<vmem>>, %arg6: memref<32x8xf32, #tpu.memory_space<vmem>>, %arg7: memref<1x8xf32, #tpu.memory_space<vmem>>, %arg8: memref<512x8xf32, #tpu.memory_space<vmem>>) attributes {dimension_semantics = [#tpu.dimension_semantics<parallel>], iteration_bounds = array<i64: 1>, scalar_prefetch = 0 : i64, scratch_operands = 0 : i64, tpu.core_type = #tpu.core_type<tc>, window_params = [{transform_indices = @transform_0, window_bounds = array<i64: 512, 16>}, {pipeline_mode = #tpu.pipeline_mode<synchronous>, transform_indices = @transform_1, window_bounds = array<i64: 16, 32>}, {pipeline_mode = #tpu.pipeline_mode<synchronous>, transform_indices = @transform_2, window_bounds = array<i64: 1, 32>}, {pipeline_mode = #tpu.pipeline_mode<synchronous>, transform_indices = @transform_3, window_bounds = array<i64: 32, 32>}, {pipeline_mode = #tpu.pipeline_mode<synchronous>, transform_indices = @transform_4, window_bounds = array<i64: 1, 32>}, {pipeline_mode = #tpu.pipeline_mode<synchronous>, transform_indices = @transform_5, window_bounds = array<i64: 32, 8>}, {pipeline_mode = #tpu.pipeline_mode<synchronous>, transform_indices = @transform_6, window_bounds = array<i64: 1, 8>}, {transform_indices = @transform_7, window_bounds = array<i64: 512, 8>}]} {
    %c0 = arith.constant 0 : index
    %c0_0 = arith.constant 0 : index
    %0 = vector.load %arg1[%c0, %c0_0] : memref<512x16xf32, #tpu.memory_space<vmem>>, vector<512x16xf32>
    %c0_1 = arith.constant 0 : index
    %c0_2 = arith.constant 0 : index
    %1 = vector.load %arg2[%c0_1, %c0_2] : memref<16x32xf32, #tpu.memory_space<vmem>>, vector<16x32xf32>
    %cst = arith.constant dense<0.000000e+00> : vector<512x32xf32>
    %2 = tpu.matmul %0, %1, %cst {dimension_numbers = #tpu.dot_dimension_numbers<[1], [0], [0], [1], [0, 0, 1, 1], [], []>} : vector<512x16xf32>, vector<16x32xf32>, vector<512x32xf32> -> vector<512x32xf32>
    %c0_3 = arith.constant 0 : index
    %c0_4 = arith.constant 0 : index
    %3 = vector.load %arg3[%c0_3, %c0_4] : memref<1x32xf32, #tpu.memory_space<vmem>>, vector<1x32xf32>
    %4 = vector.broadcast %3 : vector<1x32xf32> to vector<512x32xf32>
    %5 = arith.addf %2, %4 : vector<512x32xf32>
    %cst_5 = arith.constant 5.000000e-01 : f32
    %6 = vector.broadcast %cst_5 : f32 to vector<512x32xf32>
    %7 = arith.mulf %6, %5 : vector<512x32xf32>
    %cst_6 = arith.constant 0.707106769 : f32
    %8 = vector.broadcast %cst_6 : f32 to vector<512x32xf32>
    %9 = arith.mulf %5, %8 : vector<512x32xf32>
    %10 = math.erf %9 : vector<512x32xf32>
    %cst_7 = arith.constant 1.000000e+00 : f32
    %11 = vector.broadcast %cst_7 : f32 to vector<512x32xf32>
    %12 = arith.addf %11, %10 : vector<512x32xf32>
    %13 = arith.mulf %7, %12 : vector<512x32xf32>
    %c0_8 = arith.constant 0 : index
    %c0_9 = arith.constant 0 : index
    %14 = vector.load %arg4[%c0_8, %c0_9] : memref<32x32xf32, #tpu.memory_space<vmem>>, vector<32x32xf32>
    %cst_10 = arith.constant dense<0.000000e+00> : vector<512x32xf32>
    %15 = tpu.matmul %13, %14, %cst_10 {dimension_numbers = #tpu.dot_dimension_numbers<[1], [0], [0], [1], [0, 0, 1, 1], [], []>} : vector<512x32xf32>, vector<32x32xf32>, vector<512x32xf32> -> vector<512x32xf32>
    %c0_11 = arith.constant 0 : index
    %c0_12 = arith.constant 0 : index
    %16 = vector.load %arg5[%c0_11, %c0_12] : memref<1x32xf32, #tpu.memory_space<vmem>>, vector<1x32xf32>
    %17 = vector.broadcast %16 : vector<1x32xf32> to vector<512x32xf32>
    %18 = arith.addf %15, %17 : vector<512x32xf32>
    %cst_13 = arith.constant 5.000000e-01 : f32
    %19 = vector.broadcast %cst_13 : f32 to vector<512x32xf32>
    %20 = arith.mulf %19, %18 : vector<512x32xf32>
    %cst_14 = arith.constant 0.707106769 : f32
    %21 = vector.broadcast %cst_14 : f32 to vector<512x32xf32>
    %22 = arith.mulf %18, %21 : vector<512x32xf32>
    %23 = math.erf %22 : vector<512x32xf32>
    %cst_15 = arith.constant 1.000000e+00 : f32
    %24 = vector.broadcast %cst_15 : f32 to vector<512x32xf32>
    %25 = arith.addf %24, %23 : vector<512x32xf32>
    %26 = arith.mulf %20, %25 : vector<512x32xf32>
    %c0_16 = arith.constant 0 : index
    %c0_17 = arith.constant 0 : index
    %27 = vector.load %arg6[%c0_16, %c0_17] : memref<32x8xf32, #tpu.memory_space<vmem>>, vector<32x8xf32>
    %cst_18 = arith.constant dense<0.000000e+00> : vector<512x8xf32>
    %28 = tpu.matmul %26, %27, %cst_18 {dimension_numbers = #tpu.dot_dimension_numbers<[1], [0], [0], [1], [0, 0, 1, 1], [], []>} : vector<512x32xf32>, vector<32x8xf32>, vector<512x8xf32> -> vector<512x8xf32>
    %c0_19 = arith.constant 0 : index
    %c0_20 = arith.constant 0 : index
    %29 = vector.load %arg7[%c0_19, %c0_20] : memref<1x8xf32, #tpu.memory_space<vmem>>, vector<1x8xf32>
    %30 = vector.broadcast %29 : vector<1x8xf32> to vector<512x8xf32>
    %31 = arith.addf %28, %30 : vector<512x8xf32>
    %c0_21 = arith.constant 0 : index
    %c0_22 = arith.constant 0 : index
    %32 = vector.load %arg8[%c0_21, %c0_22] : memref<512x8xf32, #tpu.memory_space<vmem>>, vector<512x8xf32>
    tpu.vector_store %arg8[%c0_21, %c0_22], %31 {strides = array<i32>} : memref<512x8xf32, #tpu.memory_space<vmem>>, vector<512x8xf32>,
    return
  }
  func.func @transform_0(%arg0: i32) -> (i32, i32) {
    %c0_i32 = arith.constant 0 : i32
    %c0_i32_0 = arith.constant 0 : i32
    return %arg0, %c0_i32 : i32, i32
  }
  func.func @transform_1(%arg0: i32) -> (i32, i32) {
    %c0_i32 = arith.constant 0 : i32
    %c0_i32_0 = arith.constant 0 : i32
    %c0_i32_1 = arith.constant 0 : i32
    return %c0_i32, %c0_i32_0 : i32, i32
  }
  func.func @transform_2(%arg0: i32) -> (i32, i32) {
    %c0_i32 = arith.constant 0 : i32
    %c0_i32_0 = arith.constant 0 : i32
    %c0_i32_1 = arith.constant 0 : i32
    return %c0_i32, %c0_i32_0 : i32, i32
  }
  func.func @transform_3(%arg0: i32) -> (i32, i32) {
    %c0_i32 = arith.constant 0 : i32
    %c0_i32_0 = arith.constant 0 : i32
    %c0_i32_1 = arith.constant 0 : i32
    return %c0_i32, %c0_i32_0 : i32, i32
  }
  func.func @transform_4(%arg0: i32) -> (i32, i32) {
    %c0_i32 = arith.constant 0 : i32
    %c0_i32_0 = arith.constant 0 : i32
    %c0_i32_1 = arith.constant 0 : i32
    return %c0_i32, %c0_i32_0 : i32, i32
  }
  func.func @transform_5(%arg0: i32) -> (i32, i32) {
    %c0_i32 = arith.constant 0 : i32
    %c0_i32_0 = arith.constant 0 : i32
    %c0_i32_1 = arith.constant 0 : i32
    return %c0_i32, %c0_i32_0 : i32, i32
  }
  func.func @transform_6(%arg0: i32) -> (i32, i32) {
    %c0_i32 = arith.constant 0 : i32
    %c0_i32_0 = arith.constant 0 : i32
    %c0_i32_1 = arith.constant 0 : i32
    return %c0_i32, %c0_i32_0 : i32, i32
  }
  func.func @transform_7(%arg0: i32) -> (i32, i32) {
    %c0_i32 = arith.constant 0 : i32
    %c0_i32_0 = arith.constant 0 : i32
    return %arg0, %c0_i32 : i32, i32
  }
}

</mosaic_0001>

<llo_original>
// kernel: tpu_custom_call.1
$region0: #{tpu_custom_call.1}
  #allocation0 [shape = 'u32[]', space=smem, size = 0x4, offset = 0x4, fixed_abs, tag = 'smem constant byte address 0x4 - core index']
  #allocation1 [shape = 'u32[144,128]{1,0:T(1,128)}', space=vmem, size = 0x12000, scoped, tag = 'internal scratch']
  %s0 = inlined_call_operand.vmem [shape: f32[512,16], index: 0, kind: input, shape index: {}]
  %s1 = inlined_call_operand.vmem [shape: f32[16,32], index: 1, kind: input, shape index: {}]
  %s2 = inlined_call_operand.vmem [shape: f32[1,32], index: 2, kind: input, shape index: {}]
  %s3 = inlined_call_operand.vmem [shape: f32[32,32], index: 3, kind: input, shape index: {}]
  %s4 = inlined_call_operand.vmem [shape: f32[1,32], index: 4, kind: input, shape index: {}]
  %s5 = inlined_call_operand.vmem [shape: f32[32,8], index: 5, kind: input, shape index: {}]
  %s6 = inlined_call_operand.vmem [shape: f32[1,8], index: 6, kind: input, shape index: {}]
  %s7 = inlined_call_operand.vmem [shape: f32[512,8], index: 7, kind: output, shape index: {}]
  %s8 = sld [smem:[#allocation0]]
  $region38: #{tpu_custom_call.1} parent=0
    _
  %s10 = ssub.s32 1, %s8
  %s11 = scalar_select 0, %s10, %s8
  // Predicated region
  $region2: #{tpu_custom_call.1} parent=0 // pred_check
    _
  $region3: #{tpu_custom_call.1} parent=0 // pred_check_branch
    %13 = sbr.rel (0) target = $region5
  $region4: #{tpu_custom_call.1} parent=0 // pred_region
    _
  $region5: #{tpu_custom_call.1} parent=0 // pred_fallthru
    _
  // Predicated region
  $region6: #{tpu_custom_call.1} parent=0 // pred_check
    _
  $region7: #{tpu_custom_call.1} parent=0 // pred_check_branch
    %15 = sbr.rel (0) target = $region9
  $region8: #{tpu_custom_call.1} parent=0 // pred_region
    _
  $region9: #{tpu_custom_call.1} parent=0 // pred_fallthru
    _
  // Predicated region
  $region10: #{tpu_custom_call.1} parent=0 // pred_check
    _
  $region11: #{tpu_custom_call.1} parent=0 // pred_check_branch
    %17 = sbr.rel (0) target = $region13
  $region12: #{tpu_custom_call.1} parent=0 // pred_region
    _
  $region13: #{tpu_custom_call.1} parent=0 // pred_fallthru
    _
  // Predicated region
  $region14: #{tpu_custom_call.1} parent=0 // pred_check
    _
  $region15: #{tpu_custom_call.1} parent=0 // pred_check_branch
    %19 = sbr.rel (0) target = $region17
  $region16: #{tpu_custom_call.1} parent=0 // pred_region
    _
  $region17: #{tpu_custom_call.1} parent=0 // pred_fallthru
    _
  // Predicated region
  $region18: #{tpu_custom_call.1} parent=0 // pred_check
    _
  $region19: #{tpu_custom_call.1} parent=0 // pred_check_branch
    %21 = sbr.rel (0) target = $region21
  $region20: #{tpu_custom_call.1} parent=0 // pred_region
    _
  $region21: #{tpu_custom_call.1} parent=0 // pred_fallthru
    _
  // Predicated region
  $region22: #{tpu_custom_call.1} parent=0 // pred_check
    _
  $region23: #{tpu_custom_call.1} parent=0 // pred_check_branch
    %23 = sbr.rel (0) target = $region25
  $region24: #{tpu_custom_call.1} parent=0 // pred_region
    _
  $region25: #{tpu_custom_call.1} parent=0 // pred_fallthru
    _
  // Predicated region
  $region26: #{tpu_custom_call.1} parent=0 // pred_check
    _
  $region27: #{tpu_custom_call.1} parent=0 // pred_check_branch
    %25 = sbr.rel (0) target = $region29
  $region28: #{tpu_custom_call.1} parent=0 // pred_region
    _
  $region29: #{tpu_custom_call.1} parent=0 // pred_fallthru
    _
  %v26 = vld [vmem:[%s0] sm:$0xff]
  %v27 = vld [vmem:[%s0 + $0x8] sm:$0xff]
  %v28 = vld [vmem:[%s0 + $0x10] sm:$0xff]
  %v29 = vld [vmem:[%s0 + $0x18] sm:$0xff]
  %v30 = vld [vmem:[%s0 + $0x20] sm:$0xff]
  %v31 = vld [vmem:[%s0 + $0x28] sm:$0xff]
  %v32 = vld [vmem:[%s0 + $0x30] sm:$0xff]
  %v33 = vld [vmem:[%s0 + $0x38] sm:$0xff]
  %v34 = vld [vmem:[%s0 + $0x40] sm:$0xff]
  %v35 = vld [vmem:[%s0 + $0x48] sm:$0xff]
  %v36 = vld [vmem:[%s0 + $0x50] sm:$0xff]
  %v37 = vld [vmem:[%s0 + $0x58] sm:$0xff]
  %v38 = vld [vmem:[%s0 + $0x60] sm:$0xff]
  %v39 = vld [vmem:[%s0 + $0x68] sm:$0xff]
  %v40 = vld [vmem:[%s0 + $0x70] sm:$0xff]
  %v41 = vld [vmem:[%s0 + $0x78] sm:$0xff]
  %v42 = vld [vmem:[%s0 + $0x80] sm:$0xff]
  %v43 = vld [vmem:[%s0 + $0x88] sm:$0xff]
  %v44 = vld [vmem:[%s0 + $0x90] sm:$0xff]
  %v45 = vld [vmem:[%s0 + $0x98] sm:$0xff]
  %v46 = vld [vmem:[%s0 + $0xa0] sm:$0xff]
  %v47 = vld [vmem:[%s0 + $0xa8] sm:$0xff]
  %v48 = vld [vmem:[%s0 + $0xb0] sm:$0xff]
  %v49 = vld [vmem:[%s0 + $0xb8] sm:$0xff]
  %v50 = vld [vmem:[%s0 + $0xc0] sm:$0xff]
  %v51 = vld [vmem:[%s0 + $0xc8] sm:$0xff]
  %v52 = vld [vmem:[%s0 + $0xd0] sm:$0xff]
  %v53 = vld [vmem:[%s0 + $0xd8] sm:$0xff]
  %v54 = vld [vmem:[%s0 + $0xe0] sm:$0xff]
  %v55 = vld [vmem:[%s0 + $0xe8] sm:$0xff]
  %v56 = vld [vmem:[%s0 + $0xf0] sm:$0xff]
  %v57 = vld [vmem:[%s0 + $0xf8] sm:$0xff]
  %v58 = vld [vmem:[%s0 + $0x100] sm:$0xff]
  %v59 = vld [vmem:[%s0 + $0x108] sm:$0xff]
  %v60 = vld [vmem:[%s0 + $0x110] sm:$0xff]
  %v61 = vld [vmem:[%s0 + $0x118] sm:$0xff]
  %v62 = vld [vmem:[%s0 + $0x120] sm:$0xff]
  %v63 = vld [vmem:[%s0 + $0x128] sm:$0xff]
  %v64 = vld [vmem:[%s0 + $0x130] sm:$0xff]
  %v65 = vld [vmem:[%s0 + $0x138] sm:$0xff]
  %v66 = vld [vmem:[%s0 + $0x140] sm:$0xff]
  %v67 = vld [vmem:[%s0 + $0x148] sm:$0xff]
  %v68 = vld [vmem:[%s0 + $0x150] sm:$0xff]
  %v69 = vld [vmem:[%s0 + $0x158] sm:$0xff]
  %v70 = vld [vmem:[%s0 + $0x160] sm:$0xff]
  %v71 = vld [vmem:[%s0 + $0x168] sm:$0xff]
  %v72 = vld [vmem:[%s0 + $0x170] sm:$0xff]
  %v73 = vld [vmem:[%s0 + $0x178] sm:$0xff]
  %v74 = vld [vmem:[%s0 + $0x180] sm:$0xff]
  %v75 = vld [vmem:[%s0 + $0x188] sm:$0xff]
  %v76 = vld [vmem:[%s0 + $0x190] sm:$0xff]
  %v77 = vld [vmem:[%s0 + $0x198] sm:$0xff]
  %v78 = vld [vmem:[%s0 + $0x1a0] sm:$0xff]
  %v79 = vld [vmem:[%s0 + $0x1a8] sm:$0xff]
  %v80 = vld [vmem:[%s0 + $0x1b0] sm:$0xff]
  %v81 = vld [vmem:[%s0 + $0x1b8] sm:$0xff]
  %v82 = vld [vmem:[%s0 + $0x1c0] sm:$0xff]
  %v83 = vld [vmem:[%s0 + $0x1c8] sm:$0xff]
  %v84 = vld [vmem:[%s0 + $0x1d0] sm:$0xff]
  %v85 = vld [vmem:[%s0 + $0x1d8] sm:$0xff]
  %v86 = vld [vmem:[%s0 + $0x1e0] sm:$0xff]
  %v87 = vld [vmem:[%s0 + $0x1e8] sm:$0xff]
  %v88 = vld [vmem:[%s0 + $0x1f0] sm:$0xff]
  %v89 = vld [vmem:[%s0 + $0x1f8] sm:$0xff]
  %v90 = vld [vmem:[%s1] sm:$0xff]
  %v91 = vld [vmem:[%s1 + $0x8] sm:$0xff]
  %v92 = vld [vmem:[%s2] sm:$0x1]
  %v94 = vlaneseq
  %v95 = vshrl.u32 %v94, 7
  %v96 = vsub.s32 0, %v95
  %v97 = vrot.slane %v92, %v96
  %vm99 = vcmask 130048
  %v101 = vsel %vm99, %v26, 0
  %v104 = vsel %vm99, %v27, 0
  %v107 = vsel %vm99, %v28, 0
  %v110 = vsel %vm99, %v29, 0
  %v113 = vsel %vm99, %v30, 0
  %v116 = vsel %vm99, %v31, 0
  %v119 = vsel %vm99, %v32, 0
  %v122 = vsel %vm99, %v33, 0
  %v125 = vsel %vm99, %v34, 0
  %v128 = vsel %vm99, %v35, 0
  %v131 = vsel %vm99, %v36, 0
  %v134 = vsel %vm99, %v37, 0
  %v137 = vsel %vm99, %v38, 0
  %v140 = vsel %vm99, %v39, 0
  %v143 = vsel %vm99, %v40, 0
  %v146 = vsel %vm99, %v41, 0
  %v149 = vsel %vm99, %v42, 0
  %v152 = vsel %vm99, %v43, 0
  %v155 = vsel %vm99, %v44, 0
  %v158 = vsel %vm99, %v45, 0
  %v161 = vsel %vm99, %v46, 0
  %v164 = vsel %vm99, %v47, 0
  %v167 = vsel %vm99, %v48, 0
  %v170 = vsel %vm99, %v49, 0
  %v173 = vsel %vm99, %v50, 0
  %v176 = vsel %vm99, %v51, 0
  %v179 = vsel %vm99, %v52, 0
  %v182 = vsel %vm99, %v53, 0
  %v185 = vsel %vm99, %v54, 0
  %v188 = vsel %vm99, %v55, 0
  %v191 = vsel %vm99, %v56, 0
  %v194 = vsel %vm99, %v57, 0
  %v197 = vsel %vm99, %v58, 0
  %v200 = vsel %vm99, %v59, 0
  %v203 = vsel %vm99, %v60, 0
  %v206 = vsel %vm99, %v61, 0
  %v209 = vsel %vm99, %v62, 0
  %v212 = vsel %vm99, %v63, 0
  %v215 = vsel %vm99, %v64, 0
  %v218 = vsel %vm99, %v65, 0
  %v221 = vsel %vm99, %v66, 0
  %v224 = vsel %vm99, %v67, 0
  %v227 = vsel %vm99, %v68, 0
  %v230 = vsel %vm99, %v69, 0
  %v233 = vsel %vm99, %v70, 0
  %v236 = vsel %vm99, %v71, 0
  %v239 = vsel %vm99, %v72, 0
  %v242 = vsel %vm99, %v73, 0
  %v245 = vsel %vm99, %v74, 0
  %v248 = vsel %vm99, %v75, 0
  %v251 = vsel %vm99, %v76, 0
  %v254 = vsel %vm99, %v77, 0
  %v257 = vsel %vm99, %v78, 0
  %v260 = vsel %vm99, %v79, 0
  %v263 = vsel %vm99, %v80, 0
  %v266 = vsel %vm99, %v81, 0
  %v269 = vsel %vm99, %v82, 0
  %v272 = vsel %vm99, %v83, 0
  %v275 = vsel %vm99, %v84, 0
  %v278 = vsel %vm99, %v85, 0
  %v281 = vsel %vm99, %v86, 0
  %v284 = vsel %vm99, %v87, 0
  %v287 = vsel %vm99, %v88, 0
  %v290 = vsel %vm99, %v89, 0
  %292 = vmatprep.subr.mxu0 0.0
  %293 = vmatpush1.msra.mxu0 %v90
  %294 = vmatprep.subr.mxu0 0.0
  %295 = vmatpush1.msra.mxu0 %v91
  %296 = vmatprep.subr.mxu0 0.0
  %297 = vmatpush1.msra.mxu0 0.0
  %298 = vmatprep.subr.mxu0 0.0
  %299 = vmatpush1.msra.mxu0 0.0
  %300 = vmatprep.subr.mxu0 0.0
  %301 = vmatpush1.msra.mxu0 0.0
  %302 = vmatprep.subr.mxu0 0.0
  %303 = vmatpush1.msra.mxu0 0.0
  %304 = vmatprep.subr.mxu0 0.0
  %305 = vmatpush1.msra.mxu0 0.0
  %306 = vmatprep.subr.mxu0 0.0
  %307 = vmatpush1.msra.mxu0 0.0
  %308 = vmatprep.subr.mxu0 0.0
  %309 = vmatpush1.msra.mxu0 0.0
  %310 = vmatprep.subr.mxu0 0.0
  %311 = vmatpush1.msra.mxu0 0.0
  %312 = vmatprep.subr.mxu0 0.0
  %313 = vmatpush1.msra.mxu0 0.0
  %314 = vmatprep.subr.mxu0 0.0
  %315 = vmatpush1.msra.mxu0 0.0
  %316 = vmatprep.subr.mxu0 0.0
  %317 = vmatpush1.msra.mxu0 0.0
  %318 = vmatprep.subr.mxu0 0.0
  %319 = vmatpush1.msra.mxu0 0.0
  %320 = vmatprep.subr.mxu0 0.0
  %321 = vmatpush1.msra.mxu0 0.0
  %322 = vmatprep.subr.mxu0 0.0
  %323 = vmatpush1.msra.mxu0 0.0
  %324 = vmatprep.subr.mxu0 0.0
  %325 = vmatpush1.msra.mxu0 0.0
  %326 = vmatprep.subr.mxu0 0.0
  %327 = vmatpush1.msra.mxu0 0.0
  %328 = vmatprep.subr.mxu0 0.0
  %329 = vmatpush1.msra.mxu0 0.0
  %330 = vmatprep.subr.mxu0 0.0
  %331 = vmatpush1.msra.mxu0 0.0
  %332 = vmatprep.subr.mxu0 0.0
  %333 = vmatpush1.msra.mxu0 0.0
  %334 = vmatprep.subr.mxu0 0.0
  %335 = vmatpush1.msra.mxu0 0.0
  %336 = vmatprep.subr.mxu0 0.0
  %337 = vmatpush1.msra.mxu0 0.0
  %338 = vmatprep.subr.mxu0 0.0
  %339 = vmatpush1.msra.mxu0 0.0
  %340 = vmatprep.subr.mxu0 0.0
  %341 = vmatpush1.msra.mxu0 0.0
  %342 = vmatprep.subr.mxu0 0.0
  %343 = vmatpush1.msra.mxu0 0.0
  %344 = vmatprep.subr.mxu0 0.0
  %345 = vmatpush1.msra.mxu0 0.0
  %346 = vmatprep.subr.mxu0 0.0
  %347 = vmatpush1.msra.mxu0 0.0
  %348 = vmatprep.subr.mxu0 0.0
  %349 = vmatpush1.msra.mxu0 0.0
  %350 = vmatprep.subr.mxu0 0.0
  %351 = vmatpush1.msra.mxu0 0.0
  %352 = vmatprep.subr.mxu0 0.0
  %353 = vmatpush1.msra.mxu0 0.0
  %354 = vmatprep.subr.mxu0 0.0
  %355 = vmatpush1.msra.mxu0 0.0
  %356 = vmatprep.mubr.f32.mxu0 0.0
  %357 = vmatmul.mubr.f32.gmra.mrb[0].mxu0 %v101
  %v358 = vpop.f32.mrb[0].mxu0
  %v359 = vadd.f32 %v97, %v358
  %v360 = vpop.f32.mrb[0].mxu0
  %361 = vmatprep.mubr.f32.mxu0 0.0
  %362 = vmatmul.mubr.f32.gmra.mrb[0].mxu0 %v104
  %v363 = vpop.f32.mrb[0].mxu0
  %v364 = vadd.f32 %v97, %v363
  %v365 = vpop.f32.mrb[0].mxu0
  %366 = vmatprep.mubr.f32.mxu0 0.0
  %367 = vmatmul.mubr.f32.gmra.mrb[0].mxu0 %v107
  %v368 = vpop.f32.mrb[0].mxu0
  %v369 = vadd.f32 %v97, %v368
  %v370 = vpop.f32.mrb[0].mxu0
  %371 = vmatprep.mubr.f32.mxu0 0.0
  %372 = vmatmul.mubr.f32.gmra.mrb[0].mxu0 %v110
  %v373 = vpop.f32.mrb[0].mxu0
  %v374 = vadd.f32 %v97, %v373
  %v375 = vpop.f32.mrb[0].mxu0
  %376 = vmatprep.mubr.f32.mxu0 0.0
  %377 = vmatmul.mubr.f32.gmra.mrb[0].mxu0 %v113
  %v378 = vpop.f32.mrb[0].mxu0
  %v379 = vadd.f32 %v97, %v378
  %v380 = vpop.f32.mrb[0].mxu0
  %381 = vmatprep.mubr.f32.mxu0 0.0
  %382 = vmatmul.mubr.f32.gmra.mrb[0].mxu0 %v116
  %v383 = vpop.f32.mrb[0].mxu0
  %v384 = vadd.f32 %v97, %v383
  %v385 = vpop.f32.mrb[0].mxu0
  %386 = vmatprep.mubr.f32.mxu0 0.0
  %387 = vmatmul.mubr.f32.gmra.mrb[0].mxu0 %v119
  %v388 = vpop.f32.mrb[0].mxu0
  %v389 = vadd.f32 %v97, %v388
  %v390 = vpop.f32.mrb[0].mxu0
  %391 = vmatprep.mubr.f32.mxu0 0.0
  %392 = vmatmul.mubr.f32.gmra.mrb[0].mxu0 %v122
  %v393 = vpop.f32.mrb[0].mxu0
  %v394 = vadd.f32 %v97, %v393
  %v395 = vpop.f32.mrb[0].mxu0
  %396 = vmatprep.mubr.f32.mxu0 0.0
  %397 = vmatmul.mubr.f32.gmra.mrb[0].mxu0 %v125
  %v398 = vpop.f32.mrb[0].mxu0
  %v399 = vadd.f32 %v97, %v398
  %v400 = vpop.f32.mrb[0].mxu0
  %401 = vmatprep.mubr.f32.mxu0 0.0
  %402 = vmatmul.mubr.f32.gmra.mrb[0].mxu0 %v128
  %v403 = vpop.f32.mrb[0].mxu0
  %v404 = vadd.f32 %v97, %v403
  %v405 = vpop.f32.mrb[0].mxu0
  %406 = vmatprep.mubr.f32.mxu0 0.0
  %407 = vmatmul.mubr.f32.gmra.mrb[0].mxu0 %v131
  %v408 = vpop.f32.mrb[0].mxu0
  %v409 = vadd.f32 %v97, %v408
  %v410 = vpop.f32.mrb[0].mxu0
  %411 = vmatprep.mubr.f32.mxu0 0.0
  %412 = vmatmul.mubr.f32.gmra.mrb[0].mxu0 %v134
  %v413 = vpop.f32.mrb[0].mxu0
  %v414 = vadd.f32 %v97, %v413
  %v415 = vpop.f32.mrb[0].mxu0
  %416 = vmatprep.mubr.f32.mxu0 0.0
  %417 = vmatmul.mubr.f32.gmra.mrb[0].mxu0 %v137
  %v418 = vpop.f32.mrb[0].mxu0
  %v419 = vadd.f32 %v97, %v418
  %v420 = vpop.f32.mrb[0].mxu0
  %421 = vmatprep.mubr.f32.mxu0 0.0
  %422 = vmatmul.mubr.f32.gmra.mrb[0].mxu0 %v140
  %v423 = vpop.f32.mrb[0].mxu0
  %v424 = vadd.f32 %v97, %v423
  %v425 = vpop.f32.mrb[0].mxu0
  %426 = vmatprep.mubr.f32.mxu0 0.0
  %427 = vmatmul.mubr.f32.gmra.mrb[0].mxu0 %v143
  %v428 = vpop.f32.mrb[0].mxu0
  %v429 = vadd.f32 %v97, %v428
  %v430 = vpop.f32.mrb[0].mxu0
  %431 = vmatprep.mubr.f32.mxu0 0.0
  %432 = vmatmul.mubr.f32.gmra.mrb[0].mxu0 %v146
  %v433 = vpop.f32.mrb[0].mxu0
  %v434 = vadd.f32 %v97, %v433
  %v435 = vpop.f32.mrb[0].mxu0
  %436 = vmatprep.mubr.f32.mxu0 0.0
  %437 = vmatmul.mubr.f32.gmra.mrb[0].mxu0 %v149
  %v438 = vpop.f32.mrb[0].mxu0
  %v439 = vadd.f32 %v97, %v438
  %v440 = vpop.f32.mrb[0].mxu0
  %441 = vmatprep.mubr.f32.mxu0 0.0
  %442 = vmatmul.mubr.f32.gmra.mrb[0].mxu0 %v152
  %v443 = vpop.f32.mrb[0].mxu0
  %v444 = vadd.f32 %v97, %v443
  %v445 = vpop.f32.mrb[0].mxu0
  %446 = vmatprep.mubr.f32.mxu0 0.0
  %447 = vmatmul.mubr.f32.gmra.mrb[0].mxu0 %v155
  %v448 = vpop.f32.mrb[0].mxu0
  %v449 = vadd.f32 %v97, %v448
  %v450 = vpop.f32.mrb[0].mxu0
  %451 = vmatprep.mubr.f32.mxu0 0.0
  %452 = vmatmul.mubr.f32.gmra.mrb[0].mxu0 %v158
  %v453 = vpop.f32.mrb[0].mxu0
  %v454 = vadd.f32 %v97, %v453
  %v455 = vpop.f32.mrb[0].mxu0
  %456 = vmatprep.mubr.f32.mxu0 0.0
  %457 = vmatmul.mubr.f32.gmra.mrb[0].mxu0 %v161
  %v458 = vpop.f32.mrb[0].mxu0
  %v459 = vadd.f32 %v97, %v458
  %v460 = vpop.f32.mrb[0].mxu0
  %461 = vmatprep.mubr.f32.mxu0 0.0
  %462 = vmatmul.mubr.f32.gmra.mrb[0].mxu0 %v164
  %v463 = vpop.f32.mrb[0].mxu0
  %v464 = vadd.f32 %v97, %v463
  %v465 = vpop.f32.mrb[0].mxu0
  %466 = vmatprep.mubr.f32.mxu0 0.0
  %467 = vmatmul.mubr.f32.gmra.mrb[0].mxu0 %v167
  %v468 = vpop.f32.mrb[0].mxu0
  %v469 = vadd.f32 %v97, %v468
  %v470 = vpop.f32.mrb[0].mxu0
  %471 = vmatprep.mubr.f32.mxu0 0.0
  %472 = vmatmul.mubr.f32.gmra.mrb[0].mxu0 %v170
  %v473 = vpop.f32.mrb[0].mxu0
  %v474 = vadd.f32 %v97, %v473
  %v475 = vpop.f32.mrb[0].mxu0
  %476 = vmatprep.mubr.f32.mxu0 0.0
  %477 = vmatmul.mubr.f32.gmra.mrb[0].mxu0 %v173
  %v478 = vpop.f32.mrb[0].mxu0
  %v479 = vadd.f32 %v97, %v478
  %v480 = vpop.f32.mrb[0].mxu0
  %481 = vmatprep.mubr.f32.mxu0 0.0
  %482 = vmatmul.mubr.f32.gmra.mrb[0].mxu0 %v176
  %v483 = vpop.f32.mrb[0].mxu0
  %v484 = vadd.f32 %v97, %v483
  %v485 = vpop.f32.mrb[0].mxu0
  %486 = vmatprep.mubr.f32.mxu0 0.0
  %487 = vmatmul.mubr.f32.gmra.mrb[0].mxu0 %v179
  %v488 = vpop.f32.mrb[0].mxu0
  %v489 = vadd.f32 %v97, %v488
  %v490 = vpop.f32.mrb[0].mxu0
  %491 = vmatprep.mubr.f32.mxu0 0.0
  %492 = vmatmul.mubr.f32.gmra.mrb[0].mxu0 %v182
  %v493 = vpop.f32.mrb[0].mxu0
  %v494 = vadd.f32 %v97, %v493
  %v495 = vpop.f32.mrb[0].mxu0
  %496 = vmatprep.mubr.f32.mxu0 0.0
  %497 = vmatmul.mubr.f32.gmra.mrb[0].mxu0 %v185
  %v498 = vpop.f32.mrb[0].mxu0
  %v499 = vadd.f32 %v97, %v498
  %v500 = vpop.f32.mrb[0].mxu0
  %501 = vmatprep.mubr.f32.mxu0 0.0
  %502 = vmatmul.mubr.f32.gmra.mrb[0].mxu0 %v188
  %v503 = vpop.f32.mrb[0].mxu0
  %v504 = vadd.f32 %v97, %v503
  %v505 = vpop.f32.mrb[0].mxu0
  %506 = vmatprep.mubr.f32.mxu0 0.0
  %507 = vmatmul.mubr.f32.gmra.mrb[0].mxu0 %v191
  %v508 = vpop.f32.mrb[0].mxu0
  %v509 = vadd.f32 %v97, %v508
  %v510 = vpop.f32.mrb[0].mxu0
  %511 = vmatprep.mubr.f32.mxu0 0.0
  %512 = vmatmul.mubr.f32.gmra.mrb[0].mxu0 %v194
  %v513 = vpop.f32.mrb[0].mxu0
  %v514 = vadd.f32 %v97, %v513
  %v515 = vpop.f32.mrb[0].mxu0
  %516 = vmatprep.mubr.f32.mxu0 0.0
  %517 = vmatmul.mubr.f32.gmra.mrb[0].mxu0 %v197
  %v518 = vpop.f32.mrb[0].mxu0
  %v519 = vadd.f32 %v97, %v518
  %v520 = vpop.f32.mrb[0].mxu0
  %521 = vmatprep.mubr.f32.mxu0 0.0
  %522 = vmatmul.mubr.f32.gmra.mrb[0].mxu0 %v200
  %v523 = vpop.f32.mrb[0].mxu0
  %v524 = vadd.f32 %v97, %v523
  %v525 = vpop.f32.mrb[0].mxu0
  %526 = vmatprep.mubr.f32.mxu0 0.0
  %527 = vmatmul.mubr.f32.gmra.mrb[0].mxu0 %v203
  %v528 = vpop.f32.mrb[0].mxu0
  %v529 = vadd.f32 %v97, %v528
  %v530 = vpop.f32.mrb[0].mxu0
  %531 = vmatprep.mubr.f32.mxu0 0.0
  %532 = vmatmul.mubr.f32.gmra.mrb[0].mxu0 %v206
  %v533 = vpop.f32.mrb[0].mxu0
  %v534 = vadd.f32 %v97, %v533
  %v535 = vpop.f32.mrb[0].mxu0
  %536 = vmatprep.mubr.f32.mxu0 0.0
  %537 = vmatmul.mubr.f32.gmra.mrb[0].mxu0 %v209
  %v538 = vpop.f32.mrb[0].mxu0
  %v539 = vadd.f32 %v97, %v538
  %v540 = vpop.f32.mrb[0].mxu0
  %541 = vmatprep.mubr.f32.mxu0 0.0
  %542 = vmatmul.mubr.f32.gmra.mrb[0].mxu0 %v212
  %v543 = vpop.f32.mrb[0].mxu0
  %v544 = vadd.f32 %v97, %v543
  %v545 = vpop.f32.mrb[0].mxu0
  %546 = vmatprep.mubr.f32.mxu0 0.0
  %547 = vmatmul.mubr.f32.gmra.mrb[0].mxu0 %v215
  %v548 = vpop.f32.mrb[0].mxu0
  %v549 = vadd.f32 %v97, %v548
  %v550 = vpop.f32.mrb[0].mxu0
  %551 = vmatprep.mubr.f32.mxu0 0.0
  %552 = vmatmul.mubr.f32.gmra.mrb[0].mxu0 %v218
  %v553 = vpop.f32.mrb[0].mxu0
  %v554 = vadd.f32 %v97, %v553
  %v555 = vpop.f32.mrb[0].mxu0
  %556 = vmatprep.mubr.f32.mxu0 0.0
  %557 = vmatmul.mubr.f32.gmra.mrb[0].mxu0 %v221
  %v558 = vpop.f32.mrb[0].mxu0
  %v559 = vadd.f32 %v97, %v558
  %v560 = vpop.f32.mrb[0].mxu0
  %561 = vmatprep.mubr.f32.mxu0 0.0
  %562 = vmatmul.mubr.f32.gmra.mrb[0].mxu0 %v224
  %v563 = vpop.f32.mrb[0].mxu0
  %v564 = vadd.f32 %v97, %v563
  %v565 = vpop.f32.mrb[0].mxu0
  %566 = vmatprep.mubr.f32.mxu0 0.0
  %567 = vmatmul.mubr.f32.gmra.mrb[0].mxu0 %v227
  %v568 = vpop.f32.mrb[0].mxu0
  %v569 = vadd.f32 %v97, %v568
  %v570 = vpop.f32.mrb[0].mxu0
  %571 = vmatprep.mubr.f32.mxu0 0.0
  %572 = vmatmul.mubr.f32.gmra.mrb[0].mxu0 %v230
  %v573 = vpop.f32.mrb[0].mxu0
  %v574 = vadd.f32 %v97, %v573
  %v575 = vpop.f32.mrb[0].mxu0
  %576 = vmatprep.mubr.f32.mxu0 0.0
  %577 = vmatmul.mubr.f32.gmra.mrb[0].mxu0 %v233
  %v578 = vpop.f32.mrb[0].mxu0
  %v579 = vadd.f32 %v97, %v578
  %v580 = vpop.f32.mrb[0].mxu0
  %581 = vmatprep.mubr.f32.mxu0 0.0
  %582 = vmatmul.mubr.f32.gmra.mrb[0].mxu0 %v236
  %v583 = vpop.f32.mrb[0].mxu0
  %v584 = vadd.f32 %v97, %v583
  %v585 = vpop.f32.mrb[0].mxu0
  %586 = vmatprep.mubr.f32.mxu0 0.0
  %587 = vmatmul.mubr.f32.gmra.mrb[0].mxu0 %v239
  %v588 = vpop.f32.mrb[0].mxu0
  %v589 = vadd.f32 %v97, %v588
  %v590 = vpop.f32.mrb[0].mxu0
  %591 = vmatprep.mubr.f32.mxu0 0.0
  %592 = vmatmul.mubr.f32.gmra.mrb[0].mxu0 %v242
  %v593 = vpop.f32.mrb[0].mxu0
  %v594 = vadd.f32 %v97, %v593
  %v595 = vpop.f32.mrb[0].mxu0
  %596 = vmatprep.mubr.f32.mxu0 0.0
  %597 = vmatmul.mubr.f32.gmra.mrb[0].mxu0 %v245
  %v598 = vpop.f32.mrb[0].mxu0
  %v599 = vadd.f32 %v97, %v598
  %v600 = vpop.f32.mrb[0].mxu0
  %601 = vmatprep.mubr.f32.mxu0 0.0
  %602 = vmatmul.mubr.f32.gmra.mrb[0].mxu0 %v248
  %v603 = vpop.f32.mrb[0].mxu0
  %v604 = vadd.f32 %v97, %v603
  %v605 = vpop.f32.mrb[0].mxu0
  %606 = vmatprep.mubr.f32.mxu0 0.0
  %607 = vmatmul.mubr.f32.gmra.mrb[0].mxu0 %v251
  %v608 = vpop.f32.mrb[0].mxu0
  %v609 = vadd.f32 %v97, %v608
  %v610 = vpop.f32.mrb[0].mxu0
  %611 = vmatprep.mubr.f32.mxu0 0.0
  %612 = vmatmul.mubr.f32.gmra.mrb[0].mxu0 %v254
  %v613 = vpop.f32.mrb[0].mxu0
  %v614 = vadd.f32 %v97, %v613
  %v615 = vpop.f32.mrb[0].mxu0
  %616 = vmatprep.mubr.f32.mxu0 0.0
  %617 = vmatmul.mubr.f32.gmra.mrb[0].mxu0 %v257
  %v618 = vpop.f32.mrb[0].mxu0
  %v619 = vadd.f32 %v97, %v618
  %v620 = vpop.f32.mrb[0].mxu0
  %621 = vmatprep.mubr.f32.mxu0 0.0
  %622 = vmatmul.mubr.f32.gmra.mrb[0].mxu0 %v260
  %v623 = vpop.f32.mrb[0].mxu0
  %v624 = vadd.f32 %v97, %v623
  %v625 = vpop.f32.mrb[0].mxu0
  %626 = vmatprep.mubr.f32.mxu0 0.0
  %627 = vmatmul.mubr.f32.gmra.mrb[0].mxu0 %v263
  %v628 = vpop.f32.mrb[0].mxu0
  %v629 = vadd.f32 %v97, %v628
  %v630 = vpop.f32.mrb[0].mxu0
  %631 = vmatprep.mubr.f32.mxu0 0.0
  %632 = vmatmul.mubr.f32.gmra.mrb[0].mxu0 %v266
  %v633 = vpop.f32.mrb[0].mxu0
  %v634 = vadd.f32 %v97, %v633
  %v635 = vpop.f32.mrb[0].mxu0
  %636 = vmatprep.mubr.f32.mxu0 0.0
  %637 = vmatmul.mubr.f32.gmra.mrb[0].mxu0 %v269
  %v638 = vpop.f32.mrb[0].mxu0
  %v639 = vadd.f32 %v97, %v638
  %v640 = vpop.f32.mrb[0].mxu0
  %641 = vmatprep.mubr.f32.mxu0 0.0
  %642 = vmatmul.mubr.f32.gmra.mrb[0].mxu0 %v272
  %v643 = vpop.f32.mrb[0].mxu0
  %v644 = vadd.f32 %v97, %v643
  %v645 = vpop.f32.mrb[0].mxu0
  %646 = vmatprep.mubr.f32.mxu0 0.0
  %647 = vmatmul.mubr.f32.gmra.mrb[0].mxu0 %v275
  %v648 = vpop.f32.mrb[0].mxu0
  %v649 = vadd.f32 %v97, %v648
  %v650 = vpop.f32.mrb[0].mxu0
  %651 = vmatprep.mubr.f32.mxu0 0.0
  %652 = vmatmul.mubr.f32.gmra.mrb[0].mxu0 %v278
  %v653 = vpop.f32.mrb[0].mxu0
  %v654 = vadd.f32 %v97, %v653
  %v655 = vpop.f32.mrb[0].mxu0
  %656 = vmatprep.mubr.f32.mxu0 0.0
  %657 = vmatmul.mubr.f32.gmra.mrb[0].mxu0 %v281
  %v658 = vpop.f32.mrb[0].mxu0
  %v659 = vadd.f32 %v97, %v658
  %v660 = vpop.f32.mrb[0].mxu0
  %661 = vmatprep.mubr.f32.mxu0 0.0
  %662 = vmatmul.mubr.f32.gmra.mrb[0].mxu0 %v284
  %v663 = vpop.f32.mrb[0].mxu0
  %v664 = vadd.f32 %v97, %v663
  %v665 = vpop.f32.mrb[0].mxu0
  %666 = vmatprep.mubr.f32.mxu0 0.0
  %667 = vmatmul.mubr.f32.gmra.mrb[0].mxu0 %v287
  %v668 = vpop.f32.mrb[0].mxu0
  %v669 = vadd.f32 %v97, %v668
  %v670 = vpop.f32.mrb[0].mxu0
  %671 = vmatprep.mubr.f32.mxu0 0.0
  %672 = vmatmul.mubr.f32.gmra.mrb[0].mxu0 %v290
  %v673 = vpop.f32.mrb[0].mxu0
  %v674 = vadd.f32 %v97, %v673
  %v675 = vpop.f32.mrb[0].mxu0
  %676 = vdwg.mxu0
  %v677 = vmul.f32 %v359, 0.5
  %v678 = vmul.f32 %v364, 0.5
  %v679 = vmul.f32 %v369, 0.5
  %v680 = vmul.f32 %v374, 0.5
  %v681 = vmul.f32 %v379, 0.5
  %v682 = vmul.f32 %v384, 0.5
  %v683 = vmul.f32 %v389, 0.5
  %v684 = vmul.f32 %v394, 0.5
  %v685 = vmul.f32 %v399, 0.5
  %v686 = vmul.f32 %v404, 0.5
  %v687 = vmul.f32 %v409, 0.5
  %v688 = vmul.f32 %v414, 0.5
  %v689 = vmul.f32 %v419, 0.5
  %v690 = vmul.f32 %v424, 0.5
  %v691 = vmul.f32 %v429, 0.5
  %v692 = vmul.f32 %v434, 0.5
  %v693 = vmul.f32 %v439, 0.5
  %v694 = vmul.f32 %v444, 0.5
  %v695 = vmul.f32 %v449, 0.5
  %v696 = vmul.f32 %v454, 0.5
  %v697 = vmul.f32 %v459, 0.5
  %v698 = vmul.f32 %v464, 0.5
  %v699 = vmul.f32 %v469, 0.5
  %v700 = vmul.f32 %v474, 0.5
  %v701 = vmul.f32 %v479, 0.5
  %v702 = vmul.f32 %v484, 0.5
  %v703 = vmul.f32 %v489, 0.5
  %v704 = vmul.f32 %v494, 0.5
  %v705 = vmul.f32 %v499, 0.5
  %v706 = vmul.f32 %v504, 0.5
  %v707 = vmul.f32 %v509, 0.5
  %v708 = vmul.f32 %v514, 0.5
  %v709 = vmul.f32 %v519, 0.5
  %v710 = vmul.f32 %v524, 0.5
  %v711 = vmul.f32 %v529, 0.5
  %v712 = vmul.f32 %v534, 0.5
  %v713 = vmul.f32 %v539, 0.5
  %v714 = vmul.f32 %v544, 0.5
  %v715 = vmul.f32 %v549, 0.5
  %v716 = vmul.f32 %v554, 0.5
  %v717 = vmul.f32 %v559, 0.5
  %v718 = vmul.f32 %v564, 0.5
  %v719 = vmul.f32 %v569, 0.5
  %v720 = vmul.f32 %v574, 0.5
  %v721 = vmul.f32 %v579, 0.5
  %v722 = vmul.f32 %v584, 0.5
  %v723 = vmul.f32 %v589, 0.5
  %v724 = vmul.f32 %v594, 0.5
  %v725 = vmul.f32 %v599, 0.5
  %v726 = vmul.f32 %v604, 0.5
  %v727 = vmul.f32 %v609, 0.5
  %v728 = vmul.f32 %v614, 0.5
  %v729 = vmul.f32 %v619, 0.5
  %v730 = vmul.f32 %v624, 0.5
  %v731 = vmul.f32 %v629, 0.5
  %v732 = vmul.f32 %v634, 0.5
  %v733 = vmul.f32 %v639, 0.5
  %v734 = vmul.f32 %v644, 0.5
  %v735 = vmul.f32 %v649, 0.5
  %v736 = vmul.f32 %v654, 0.5
  %v737 = vmul.f32 %v659, 0.5
  %v738 = vmul.f32 %v664, 0.5
  %v739 = vmul.f32 %v669, 0.5
  %v740 = vmul.f32 %v674, 0.5
  %v741 = vmul.f32 %v359, 0.70710677
  %v742 = vmul.f32 %v364, 0.70710677
  %v743 = vmul.f32 %v369, 0.70710677
  %v744 = vmul.f32 %v374, 0.70710677
  %v745 = vmul.f32 %v379, 0.70710677
  %v746 = vmul.f32 %v384, 0.70710677
  %v747 = vmul.f32 %v389, 0.70710677
  %v748 = vmul.f32 %v394, 0.70710677
  %v749 = vmul.f32 %v399, 0.70710677
  %v750 = vmul.f32 %v404, 0.70710677
  %v751 = vmul.f32 %v409, 0.70710677
  %v752 = vmul.f32 %v414, 0.70710677
  %v753 = vmul.f32 %v419, 0.70710677
  %v754 = vmul.f32 %v424, 0.70710677
  %v755 = vmul.f32 %v429, 0.70710677
  %v756 = vmul.f32 %v434, 0.70710677
  %v757 = vmul.f32 %v439, 0.70710677
  %v758 = vmul.f32 %v444, 0.70710677
  %v759 = vmul.f32 %v449, 0.70710677
  %v760 = vmul.f32 %v454, 0.70710677
  %v761 = vmul.f32 %v459, 0.70710677
  %v762 = vmul.f32 %v464, 0.70710677
  %v763 = vmul.f32 %v469, 0.70710677
  %v764 = vmul.f32 %v474, 0.70710677
  %v765 = vmul.f32 %v479, 0.70710677
  %v766 = vmul.f32 %v484, 0.70710677
  %v767 = vmul.f32 %v489, 0.70710677
  %v768 = vmul.f32 %v494, 0.70710677
  %v769 = vmul.f32 %v499, 0.70710677
  %v770 = vmul.f32 %v504, 0.70710677
  %v771 = vmul.f32 %v509, 0.70710677
  %v772 = vmul.f32 %v514, 0.70710677
  %v773 = vmul.f32 %v519, 0.70710677
  %v774 = vmul.f32 %v524, 0.70710677
  %v775 = vmul.f32 %v529, 0.70710677
  %v776 = vmul.f32 %v534, 0.70710677
  %v777 = vmul.f32 %v539, 0.70710677
  %v778 = vmul.f32 %v544, 0.70710677
  %v779 = vmul.f32 %v549, 0.70710677
  %v780 = vmul.f32 %v554, 0.70710677
  %v781 = vmul.f32 %v559, 0.70710677
  %v782 = vmul.f32 %v564, 0.70710677
  %v783 = vmul.f32 %v569, 0.70710677
  %v784 = vmul.f32 %v574, 0.70710677
  %v785 = vmul.f32 %v579, 0.70710677
  %v786 = vmul.f32 %v584, 0.70710677
  %v787 = vmul.f32 %v589, 0.70710677
  %v788 = vmul.f32 %v594, 0.70710677
  %v789 = vmul.f32 %v599, 0.70710677
  %v790 = vmul.f32 %v604, 0.70710677
  %v791 = vmul.f32 %v609, 0.70710677
  %v792 = vmul.f32 %v614, 0.70710677
  %v793 = vmul.f32 %v619, 0.70710677
  %v794 = vmul.f32 %v624, 0.70710677
  %v795 = vmul.f32 %v629, 0.70710677
  %v796 = vmul.f32 %v634, 0.70710677
  %v797 = vmul.f32 %v639, 0.70710677
  %v798 = vmul.f32 %v644, 0.70710677
  %v799 = vmul.f32 %v649, 0.70710677
  %v800 = vmul.f32 %v654, 0.70710677
  %v801 = vmul.f32 %v659, 0.70710677
  %v802 = vmul.f32 %v664, 0.70710677
  %v803 = vmul.f32 %v669, 0.70710677
  %v804 = vmul.f32 %v674, 0.70710677
  %v805 = verf.f32.pop %v741
  %v806 = verf.f32.pop %v742
  %v807 = verf.f32.pop %v743
  %v808 = verf.f32.pop %v744
  %v809 = verf.f32.pop %v745
  %v810 = verf.f32.pop %v746
  %v811 = verf.f32.pop %v747
  %v812 = verf.f32.pop %v748
  %v813 = verf.f32.pop %v749
  %v814 = verf.f32.pop %v750
  %v815 = verf.f32.pop %v751
  %v816 = verf.f32.pop %v752
  %v817 = verf.f32.pop %v753
  %v818 = verf.f32.pop %v754
  %v819 = verf.f32.pop %v755
  %v820 = verf.f32.pop %v756
  %v821 = verf.f32.pop %v757
  %v822 = verf.f32.pop %v758
  %v823 = verf.f32.pop %v759
  %v824 = verf.f32.pop %v760
  %v825 = verf.f32.pop %v761
  %v826 = verf.f32.pop %v762
  %v827 = verf.f32.pop %v763
  %v828 = verf.f32.pop %v764
  %v829 = verf.f32.pop %v765
  %v830 = verf.f32.pop %v766
  %v831 = verf.f32.pop %v767
  %v832 = verf.f32.pop %v768
  %v833 = verf.f32.pop %v769
  %v834 = verf.f32.pop %v770
  %v835 = verf.f32.pop %v771
  %v836 = verf.f32.pop %v772
  %v837 = verf.f32.pop %v773
  %v838 = verf.f32.pop %v774
  %v839 = verf.f32.pop %v775
  %v840 = verf.f32.pop %v776
  %v841 = verf.f32.pop %v777
  %v842 = verf.f32.pop %v778
  %v843 = verf.f32.pop %v779
  %v844 = verf.f32.pop %v780
  %v845 = verf.f32.pop %v781
  %v846 = verf.f32.pop %v782
  %v847 = verf.f32.pop %v783
  %v848 = verf.f32.pop %v784
  %v849 = verf.f32.pop %v785
  %v850 = verf.f32.pop %v786
  %v851 = verf.f32.pop %v787
  %v852 = verf.f32.pop %v788
  %v853 = verf.f32.pop %v789
  %v854 = verf.f32.pop %v790
  %v855 = verf.f32.pop %v791
  %v856 = verf.f32.pop %v792
  %v857 = verf.f32.pop %v793
  %v858 = verf.f32.pop %v794
  %v859 = verf.f32.pop %v795
  %v860 = verf.f32.pop %v796
  %v861 = verf.f32.pop %v797
  %v862 = verf.f32.pop %v798
  %v863 = verf.f32.pop %v799
  %v864 = verf.f32.pop %v800
  %v865 = verf.f32.pop %v801
  %v866 = verf.f32.pop %v802
  %v867 = verf.f32.pop %v803
  %v868 = verf.f32.pop %v804
  %v869 = vadd.f32 %v805, 1.0
  %v870 = vadd.f32 %v806, 1.0
  %v871 = vadd.f32 %v807, 1.0
  %v872 = vadd.f32 %v808, 1.0
  %v873 = vadd.f32 %v809, 1.0
  %v874 = vadd.f32 %v810, 1.0
  %v875 = vadd.f32 %v811, 1.0
  %v876 = vadd.f32 %v812, 1.0
  %v877 = vadd.f32 %v813, 1.0
  %v878 = vadd.f32 %v814, 1.0
  %v879 = vadd.f32 %v815, 1.0
  %v880 = vadd.f32 %v816, 1.0
  %v881 = vadd.f32 %v817, 1.0
  %v882 = vadd.f32 %v818, 1.0
  %v883 = vadd.f32 %v819, 1.0
  %v884 = vadd.f32 %v820, 1.0
  %v885 = vadd.f32 %v821, 1.0
  %v886 = vadd.f32 %v822, 1.0
  %v887 = vadd.f32 %v823, 1.0
  %v888 = vadd.f32 %v824, 1.0
  %v889 = vadd.f32 %v825, 1.0
  %v890 = vadd.f32 %v826, 1.0
  %v891 = vadd.f32 %v827, 1.0
  %v892 = vadd.f32 %v828, 1.0
  %v893 = vadd.f32 %v829, 1.0
  %v894 = vadd.f32 %v830, 1.0
  %v895 = vadd.f32 %v831, 1.0
  %v896 = vadd.f32 %v832, 1.0
  %v897 = vadd.f32 %v833, 1.0
  %v898 = vadd.f32 %v834, 1.0
  %v899 = vadd.f32 %v835, 1.0
  %v900 = vadd.f32 %v836, 1.0
  %v901 = vadd.f32 %v837, 1.0
  %v902 = vadd.f32 %v838, 1.0
  %v903 = vadd.f32 %v839, 1.0
  %v904 = vadd.f32 %v840, 1.0
  %v905 = vadd.f32 %v841, 1.0
  %v906 = vadd.f32 %v842, 1.0
  %v907 = vadd.f32 %v843, 1.0
  %v908 = vadd.f32 %v844, 1.0
  %v909 = vadd.f32 %v845, 1.0
  %v910 = vadd.f32 %v846, 1.0
  %v911 = vadd.f32 %v847, 1.0
  %v912 = vadd.f32 %v848, 1.0
  %v913 = vadd.f32 %v849, 1.0
  %v914 = vadd.f32 %v850, 1.0
  %v915 = vadd.f32 %v851, 1.0
  %v916 = vadd.f32 %v852, 1.0
  %v917 = vadd.f32 %v853, 1.0
  %v918 = vadd.f32 %v854, 1.0
  %v919 = vadd.f32 %v855, 1.0
  %v920 = vadd.f32 %v856, 1.0
  %v921 = vadd.f32 %v857, 1.0
  %v922 = vadd.f32 %v858, 1.0
  %v923 = vadd.f32 %v859, 1.0
  %v924 = vadd.f32 %v860, 1.0
  %v925 = vadd.f32 %v861, 1.0
  %v926 = vadd.f32 %v862, 1.0
  %v927 = vadd.f32 %v863, 1.0
  %v928 = vadd.f32 %v864, 1.0
  %v929 = vadd.f32 %v865, 1.0
  %v930 = vadd.f32 %v866, 1.0
  %v931 = vadd.f32 %v867, 1.0
  %v932 = vadd.f32 %v868, 1.0
  %v933 = vmul.f32 %v677, %v869
  %v934 = vmul.f32 %v678, %v870
  %v935 = vmul.f32 %v679, %v871
  %v936 = vmul.f32 %v680, %v872
  %v937 = vmul.f32 %v681, %v873
  %v938 = vmul.f32 %v682, %v874
  %v939 = vmul.f32 %v683, %v875
  %v940 = vmul.f32 %v684, %v876
  %v941 = vmul.f32 %v685, %v877
  %v942 = vmul.f32 %v686, %v878
  %v943 = vmul.f32 %v687, %v879
  %v944 = vmul.f32 %v688, %v880
  %v945 = vmul.f32 %v689, %v881
  %v946 = vmul.f32 %v690, %v882
  %v947 = vmul.f32 %v691, %v883
  %v948 = vmul.f32 %v692, %v884
  %v949 = vmul.f32 %v693, %v885
  %v950 = vmul.f32 %v694, %v886
  %v951 = vmul.f32 %v695, %v887
  %v952 = vmul.f32 %v696, %v888
  %v953 = vmul.f32 %v697, %v889
  %v954 = vmul.f32 %v698, %v890
  %v955 = vmul.f32 %v699, %v891
  %v956 = vmul.f32 %v700, %v892
  %v957 = vmul.f32 %v701, %v893
  %v958 = vmul.f32 %v702, %v894
  %v959 = vmul.f32 %v703, %v895
  %v960 = vmul.f32 %v704, %v896
  %v961 = vmul.f32 %v705, %v897
  %v962 = vmul.f32 %v706, %v898
  %v963 = vmul.f32 %v707, %v899
  %v964 = vmul.f32 %v708, %v900
  %v965 = vmul.f32 %v709, %v901
  %v966 = vmul.f32 %v710, %v902
  %v967 = vmul.f32 %v711, %v903
  %v968 = vmul.f32 %v712, %v904
  %v969 = vmul.f32 %v713, %v905
  %v970 = vmul.f32 %v714, %v906
  %v971 = vmul.f32 %v715, %v907
  %v972 = vmul.f32 %v716, %v908
  %v973 = vmul.f32 %v717, %v909
  %v974 = vmul.f32 %v718, %v910
  %v975 = vmul.f32 %v719, %v911
  %v976 = vmul.f32 %v720, %v912
  %v977 = vmul.f32 %v721, %v913
  %v978 = vmul.f32 %v722, %v914
  %v979 = vmul.f32 %v723, %v915
  %v980 = vmul.f32 %v724, %v916
  %v981 = vmul.f32 %v725, %v917
  %v982 = vmul.f32 %v726, %v918
  %v983 = vmul.f32 %v727, %v919
  %v984 = vmul.f32 %v728, %v920
  %v985 = vmul.f32 %v729, %v921
  %v986 = vmul.f32 %v730, %v922
  %v987 = vmul.f32 %v731, %v923
  %v988 = vmul.f32 %v732, %v924
  %v989 = vmul.f32 %v733, %v925
  %v990 = vmul.f32 %v734, %v926
  %v991 = vmul.f32 %v735, %v927
  %v992 = vmul.f32 %v736, %v928
  %v993 = vmul.f32 %v737, %v929
  %v994 = vmul.f32 %v738, %v930
  %v995 = vmul.f32 %v739, %v931
  %v996 = vmul.f32 %v740, %v932
  %v997 = vld [vmem:[%s3] sm:$0xff]
  %v998 = vld [vmem:[%s3 + $0x8] sm:$0xff]
  %v999 = vld [vmem:[%s3 + $0x10] sm:$0xff]
  %v1000 = vld [vmem:[%s3 + $0x18] sm:$0xff]
  %v1001 = vld [vmem:[%s4] sm:$0x1]
  %v1003 = vlaneseq
  %v1004 = vshrl.u32 %v1003, 7
  %v1005 = vsub.s32 0, %v1004
  %v1006 = vrot.slane %v1001, %v1005
  %vm1008 = vcmask 261120
  %v1010 = vsel %vm1008, %v933, 0
  %v1013 = vsel %vm1008, %v934, 0
  %v1016 = vsel %vm1008, %v935, 0
  %v1019 = vsel %vm1008, %v936, 0
  %v1022 = vsel %vm1008, %v937, 0
  %v1025 = vsel %vm1008, %v938, 0
  %v1028 = vsel %vm1008, %v939, 0
  %v1031 = vsel %vm1008, %v940, 0
  %v1034 = vsel %vm1008, %v941, 0
  %v1037 = vsel %vm1008, %v942, 0
  %v1040 = vsel %vm1008, %v943, 0
  %v1043 = vsel %vm1008, %v944, 0
  %v1046 = vsel %vm1008, %v945, 0
  %v1049 = vsel %vm1008, %v946, 0
  %v1052 = vsel %vm1008, %v947, 0
  %v1055 = vsel %vm1008, %v948, 0
  %v1058 = vsel %vm1008, %v949, 0
  %v1061 = vsel %vm1008, %v950, 0
  %v1064 = vsel %vm1008, %v951, 0
  %v1067 = vsel %vm1008, %v952, 0
  %v1070 = vsel %vm1008, %v953, 0
  %v1073 = vsel %vm1008, %v954, 0
  %v1076 = vsel %vm1008, %v955, 0
  %v1079 = vsel %vm1008, %v956, 0
  %v1082 = vsel %vm1008, %v957, 0
  %v1085 = vsel %vm1008, %v958, 0
  %v1088 = vsel %vm1008, %v959, 0
  %v1091 = vsel %vm1008, %v960, 0
  %v1094 = vsel %vm1008, %v961, 0
  %v1097 = vsel %vm1008, %v962, 0
  %v1100 = vsel %vm1008, %v963, 0
  %v1103 = vsel %vm1008, %v964, 0
  %v1106 = vsel %vm1008, %v965, 0
  %v1109 = vsel %vm1008, %v966, 0
  %v1112 = vsel %vm1008, %v967, 0
  %v1115 = vsel %vm1008, %v968, 0
  %v1118 = vsel %vm1008, %v969, 0
  %v1121 = vsel %vm1008, %v970, 0
  %v1124 = vsel %vm1008, %v971, 0
  %v1127 = vsel %vm1008, %v972, 0
  %v1130 = vsel %vm1008, %v973, 0
  %v1133 = vsel %vm1008, %v974, 0
  %v1136 = vsel %vm1008, %v975, 0
  %v1139 = vsel %vm1008, %v976, 0
  %v1142 = vsel %vm1008, %v977, 0
  %v1145 = vsel %vm1008, %v978, 0
  %v1148 = vsel %vm1008, %v979, 0
  %v1151 = vsel %vm1008, %v980, 0
  %v1154 = vsel %vm1008, %v981, 0
  %v1157 = vsel %vm1008, %v982, 0
  %v1160 = vsel %vm1008, %v983, 0
  %v1163 = vsel %vm1008, %v984, 0
  %v1166 = vsel %vm1008, %v985, 0
  %v1169 = vsel %vm1008, %v986, 0
  %v1172 = vsel %vm1008, %v987, 0
  %v1175 = vsel %vm1008, %v988, 0
  %v1178 = vsel %vm1008, %v989, 0
  %v1181 = vsel %vm1008, %v990, 0
  %v1184 = vsel %vm1008, %v991, 0
  %v1187 = vsel %vm1008, %v992, 0
  %v1190 = vsel %vm1008, %v993, 0
  %v1193 = vsel %vm1008, %v994, 0
  %v1196 = vsel %vm1008, %v995, 0
  %v1199 = vsel %vm1008, %v996, 0
  %1201 = vmatprep.subr.mxu0 0.0
  %1202 = vmatpush1.msra.mxu0 %v997
  %1203 = vmatprep.subr.mxu0 0.0
  %1204 = vmatpush1.msra.mxu0 %v998
  %1205 = vmatprep.subr.mxu0 0.0
  %1206 = vmatpush1.msra.mxu0 %v999
  %1207 = vmatprep.subr.mxu0 0.0
  %1208 = vmatpush1.msra.mxu0 %v1000
  %1209 = vmatprep.subr.mxu0 0.0
  %1210 = vmatpush1.msra.mxu0 0.0
  %1211 = vmatprep.subr.mxu0 0.0
  %1212 = vmatpush1.msra.mxu0 0.0
  %1213 = vmatprep.subr.mxu0 0.0
  %1214 = vmatpush1.msra.mxu0 0.0
  %1215 = vmatprep.subr.mxu0 0.0
  %1216 = vmatpush1.msra.mxu0 0.0
  %1217 = vmatprep.subr.mxu0 0.0
  %1218 = vmatpush1.msra.mxu0 0.0
  %1219 = vmatprep.subr.mxu0 0.0
  %1220 = vmatpush1.msra.mxu0 0.0
  %1221 = vmatprep.subr.mxu0 0.0
  %1222 = vmatpush1.msra.mxu0 0.0
  %1223 = vmatprep.subr.mxu0 0.0
  %1224 = vmatpush1.msra.mxu0 0.0
  %1225 = vmatprep.subr.mxu0 0.0
  %1226 = vmatpush1.msra.mxu0 0.0
  %1227 = vmatprep.subr.mxu0 0.0
  %1228 = vmatpush1.msra.mxu0 0.0
  %1229 = vmatprep.subr.mxu0 0.0
  %1230 = vmatpush1.msra.mxu0 0.0
  %1231 = vmatprep.subr.mxu0 0.0
  %1232 = vmatpush1.msra.mxu0 0.0
  %1233 = vmatprep.subr.mxu0 0.0
  %1234 = vmatpush1.msra.mxu0 0.0
  %1235 = vmatprep.subr.mxu0 0.0
  %1236 = vmatpush1.msra.mxu0 0.0
  %1237 = vmatprep.subr.mxu0 0.0
  %1238 = vmatpush1.msra.mxu0 0.0
  %1239 = vmatprep.subr.mxu0 0.0
  %1240 = vmatpush1.msra.mxu0 0.0
  %1241 = vmatprep.subr.mxu0 0.0
  %1242 = vmatpush1.msra.mxu0 0.0
  %1243 = vmatprep.subr.mxu0 0.0
  %1244 = vmatpush1.msra.mxu0 0.0
  %1245 = vmatprep.subr.mxu0 0.0
  %1246 = vmatpush1.msra.mxu0 0.0
  %1247 = vmatprep.subr.mxu0 0.0
  %1248 = vmatpush1.msra.mxu0 0.0
  %1249 = vmatprep.subr.mxu0 0.0
  %1250 = vmatpush1.msra.mxu0 0.0
  %1251 = vmatprep.subr.mxu0 0.0
  %1252 = vmatpush1.msra.mxu0 0.0
  %1253 = vmatprep.subr.mxu0 0.0
  %1254 = vmatpush1.msra.mxu0 0.0
  %1255 = vmatprep.subr.mxu0 0.0
  %1256 = vmatpush1.msra.mxu0 0.0
  %1257 = vmatprep.subr.mxu0 0.0
  %1258 = vmatpush1.msra.mxu0 0.0
  %1259 = vmatprep.subr.mxu0 0.0
  %1260 = vmatpush1.msra.mxu0 0.0
  %1261 = vmatprep.subr.mxu0 0.0
  %1262 = vmatpush1.msra.mxu0 0.0
  %1263 = vmatprep.subr.mxu0 0.0
  %1264 = vmatpush1.msra.mxu0 0.0
  %1265 = vmatprep.mubr.f32.mxu0 0.0
  %1266 = vmatmul.mubr.f32.gmra.mrb[0].mxu0 %v1010
  %v1267 = vpop.f32.mrb[0].mxu0
  %v1268 = vadd.f32 %v1006, %v1267
  %v1269 = vpop.f32.mrb[0].mxu0
  %1270 = vmatprep.mubr.f32.mxu0 0.0
  %1271 = vmatmul.mubr.f32.gmra.mrb[0].mxu0 %v1013
  %v1272 = vpop.f32.mrb[0].mxu0
  %v1273 = vadd.f32 %v1006, %v1272
  %v1274 = vpop.f32.mrb[0].mxu0
  %1275 = vmatprep.mubr.f32.mxu0 0.0
  %1276 = vmatmul.mubr.f32.gmra.mrb[0].mxu0 %v1016
  %v1277 = vpop.f32.mrb[0].mxu0
  %v1278 = vadd.f32 %v1006, %v1277
  %v1279 = vpop.f32.mrb[0].mxu0
  %1280 = vmatprep.mubr.f32.mxu0 0.0
  %1281 = vmatmul.mubr.f32.gmra.mrb[0].mxu0 %v1019
  %v1282 = vpop.f32.mrb[0].mxu0
  %v1283 = vadd.f32 %v1006, %v1282
  %v1284 = vpop.f32.mrb[0].mxu0
  %1285 = vmatprep.mubr.f32.mxu0 0.0
  %1286 = vmatmul.mubr.f32.gmra.mrb[0].mxu0 %v1022
  %v1287 = vpop.f32.mrb[0].mxu0
  %v1288 = vadd.f32 %v1006, %v1287
  %v1289 = vpop.f32.mrb[0].mxu0
  %1290 = vmatprep.mubr.f32.mxu0 0.0
  %1291 = vmatmul.mubr.f32.gmra.mrb[0].mxu0 %v1025
  %v1292 = vpop.f32.mrb[0].mxu0
  %v1293 = vadd.f32 %v1006, %v1292
  %v1294 = vpop.f32.mrb[0].mxu0
  %1295 = vmatprep.mubr.f32.mxu0 0.0
  %1296 = vmatmul.mubr.f32.gmra.mrb[0].mxu0 %v1028
  %v1297 = vpop.f32.mrb[0].mxu0
  %v1298 = vadd.f32 %v1006, %v1297
  %v1299 = vpop.f32.mrb[0].mxu0
  %1300 = vmatprep.mubr.f32.mxu0 0.0
  %1301 = vmatmul.mubr.f32.gmra.mrb[0].mxu0 %v1031
  %v1302 = vpop.f32.mrb[0].mxu0
  %v1303 = vadd.f32 %v1006, %v1302
  %v1304 = vpop.f32.mrb[0].mxu0
  %1305 = vmatprep.mubr.f32.mxu0 0.0
  %1306 = vmatmul.mubr.f32.gmra.mrb[0].mxu0 %v1034
  %v1307 = vpop.f32.mrb[0].mxu0
  %v1308 = vadd.f32 %v1006, %v1307
  %v1309 = vpop.f32.mrb[0].mxu0
  %1310 = vmatprep.mubr.f32.mxu0 0.0
  %1311 = vmatmul.mubr.f32.gmra.mrb[0].mxu0 %v1037
  %v1312 = vpop.f32.mrb[0].mxu0
  %v1313 = vadd.f32 %v1006, %v1312
  %v1314 = vpop.f32.mrb[0].mxu0
  %1315 = vmatprep.mubr.f32.mxu0 0.0
  %1316 = vmatmul.mubr.f32.gmra.mrb[0].mxu0 %v1040
  %v1317 = vpop.f32.mrb[0].mxu0
  %v1318 = vadd.f32 %v1006, %v1317
  %v1319 = vpop.f32.mrb[0].mxu0
  %1320 = vmatprep.mubr.f32.mxu0 0.0
  %1321 = vmatmul.mubr.f32.gmra.mrb[0].mxu0 %v1043
  %v1322 = vpop.f32.mrb[0].mxu0
  %v1323 = vadd.f32 %v1006, %v1322
  %v1324 = vpop.f32.mrb[0].mxu0
  %1325 = vmatprep.mubr.f32.mxu0 0.0
  %1326 = vmatmul.mubr.f32.gmra.mrb[0].mxu0 %v1046
  %v1327 = vpop.f32.mrb[0].mxu0
  %v1328 = vadd.f32 %v1006, %v1327
  %v1329 = vpop.f32.mrb[0].mxu0
  %1330 = vmatprep.mubr.f32.mxu0 0.0
  %1331 = vmatmul.mubr.f32.gmra.mrb[0].mxu0 %v1049
  %v1332 = vpop.f32.mrb[0].mxu0
  %v1333 = vadd.f32 %v1006, %v1332
  %v1334 = vpop.f32.mrb[0].mxu0
  %1335 = vmatprep.mubr.f32.mxu0 0.0
  %1336 = vmatmul.mubr.f32.gmra.mrb[0].mxu0 %v1052
  %v1337 = vpop.f32.mrb[0].mxu0
  %v1338 = vadd.f32 %v1006, %v1337
  %v1339 = vpop.f32.mrb[0].mxu0
  %1340 = vmatprep.mubr.f32.mxu0 0.0
  %1341 = vmatmul.mubr.f32.gmra.mrb[0].mxu0 %v1055
  %v1342 = vpop.f32.mrb[0].mxu0
  %v1343 = vadd.f32 %v1006, %v1342
  %v1344 = vpop.f32.mrb[0].mxu0
  %1345 = vmatprep.mubr.f32.mxu0 0.0
  %1346 = vmatmul.mubr.f32.gmra.mrb[0].mxu0 %v1058
  %v1347 = vpop.f32.mrb[0].mxu0
  %v1348 = vadd.f32 %v1006, %v1347
  %v1349 = vpop.f32.mrb[0].mxu0
  %1350 = vmatprep.mubr.f32.mxu0 0.0
  %1351 = vmatmul.mubr.f32.gmra.mrb[0].mxu0 %v1061
  %v1352 = vpop.f32.mrb[0].mxu0
  %v1353 = vadd.f32 %v1006, %v1352
  %v1354 = vpop.f32.mrb[0].mxu0
  %1355 = vmatprep.mubr.f32.mxu0 0.0
  %1356 = vmatmul.mubr.f32.gmra.mrb[0].mxu0 %v1064
  %v1357 = vpop.f32.mrb[0].mxu0
  %v1358 = vadd.f32 %v1006, %v1357
  %v1359 = vpop.f32.mrb[0].mxu0
  %1360 = vmatprep.mubr.f32.mxu0 0.0
  %1361 = vmatmul.mubr.f32.gmra.mrb[0].mxu0 %v1067
  %v1362 = vpop.f32.mrb[0].mxu0
  %v1363 = vadd.f32 %v1006, %v1362
  %v1364 = vpop.f32.mrb[0].mxu0
  %1365 = vmatprep.mubr.f32.mxu0 0.0
  %1366 = vmatmul.mubr.f32.gmra.mrb[0].mxu0 %v1070
  %v1367 = vpop.f32.mrb[0].mxu0
  %v1368 = vadd.f32 %v1006, %v1367
  %v1369 = vpop.f32.mrb[0].mxu0
  %1370 = vmatprep.mubr.f32.mxu0 0.0
  %1371 = vmatmul.mubr.f32.gmra.mrb[0].mxu0 %v1073
  %v1372 = vpop.f32.mrb[0].mxu0
  %v1373 = vadd.f32 %v1006, %v1372
  %v1374 = vpop.f32.mrb[0].mxu0
  %1375 = vmatprep.mubr.f32.mxu0 0.0
  %1376 = vmatmul.mubr.f32.gmra.mrb[0].mxu0 %v1076
  %v1377 = vpop.f32.mrb[0].mxu0
  %v1378 = vadd.f32 %v1006, %v1377
  %v1379 = vpop.f32.mrb[0].mxu0
  %1380 = vmatprep.mubr.f32.mxu0 0.0
  %1381 = vmatmul.mubr.f32.gmra.mrb[0].mxu0 %v1079
  %v1382 = vpop.f32.mrb[0].mxu0
  %v1383 = vadd.f32 %v1006, %v1382
  %v1384 = vpop.f32.mrb[0].mxu0
  %1385 = vmatprep.mubr.f32.mxu0 0.0
  %1386 = vmatmul.mubr.f32.gmra.mrb[0].mxu0 %v1082
  %v1387 = vpop.f32.mrb[0].mxu0
  %v1388 = vadd.f32 %v1006, %v1387
  %v1389 = vpop.f32.mrb[0].mxu0
  %1390 = vmatprep.mubr.f32.mxu0 0.0
  %1391 = vmatmul.mubr.f32.gmra.mrb[0].mxu0 %v1085
  %v1392 = vpop.f32.mrb[0].mxu0
  %v1393 = vadd.f32 %v1006, %v1392
  %v1394 = vpop.f32.mrb[0].mxu0
  %1395 = vmatprep.mubr.f32.mxu0 0.0
  %1396 = vmatmul.mubr.f32.gmra.mrb[0].mxu0 %v1088
  %v1397 = vpop.f32.mrb[0].mxu0
  %v1398 = vadd.f32 %v1006, %v1397
  %v1399 = vpop.f32.mrb[0].mxu0
  %1400 = vmatprep.mubr.f32.mxu0 0.0
  %1401 = vmatmul.mubr.f32.gmra.mrb[0].mxu0 %v1091
  %v1402 = vpop.f32.mrb[0].mxu0
  %v1403 = vadd.f32 %v1006, %v1402
  %v1404 = vpop.f32.mrb[0].mxu0
  %1405 = vmatprep.mubr.f32.mxu0 0.0
  %1406 = vmatmul.mubr.f32.gmra.mrb[0].mxu0 %v1094
  %v1407 = vpop.f32.mrb[0].mxu0
  %v1408 = vadd.f32 %v1006, %v1407
  %v1409 = vpop.f32.mrb[0].mxu0
  %1410 = vmatprep.mubr.f32.mxu0 0.0
  %1411 = vmatmul.mubr.f32.gmra.mrb[0].mxu0 %v1097
  %v1412 = vpop.f32.mrb[0].mxu0
  %v1413 = vadd.f32 %v1006, %v1412
  %v1414 = vpop.f32.mrb[0].mxu0
  %1415 = vmatprep.mubr.f32.mxu0 0.0
  %1416 = vmatmul.mubr.f32.gmra.mrb[0].mxu0 %v1100
  %v1417 = vpop.f32.mrb[0].mxu0
  %v1418 = vadd.f32 %v1006, %v1417
  %v1419 = vpop.f32.mrb[0].mxu0
  %1420 = vmatprep.mubr.f32.mxu0 0.0
  %1421 = vmatmul.mubr.f32.gmra.mrb[0].mxu0 %v1103
  %v1422 = vpop.f32.mrb[0].mxu0
  %v1423 = vadd.f32 %v1006, %v1422
  %v1424 = vpop.f32.mrb[0].mxu0
  %1425 = vmatprep.mubr.f32.mxu0 0.0
  %1426 = vmatmul.mubr.f32.gmra.mrb[0].mxu0 %v1106
  %v1427 = vpop.f32.mrb[0].mxu0
  %v1428 = vadd.f32 %v1006, %v1427
  %v1429 = vpop.f32.mrb[0].mxu0
  %1430 = vmatprep.mubr.f32.mxu0 0.0
  %1431 = vmatmul.mubr.f32.gmra.mrb[0].mxu0 %v1109
  %v1432 = vpop.f32.mrb[0].mxu0
  %v1433 = vadd.f32 %v1006, %v1432
  %v1434 = vpop.f32.mrb[0].mxu0
  %1435 = vmatprep.mubr.f32.mxu0 0.0
  %1436 = vmatmul.mubr.f32.gmra.mrb[0].mxu0 %v1112
  %v1437 = vpop.f32.mrb[0].mxu0
  %v1438 = vadd.f32 %v1006, %v1437
  %v1439 = vpop.f32.mrb[0].mxu0
  %1440 = vmatprep.mubr.f32.mxu0 0.0
  %1441 = vmatmul.mubr.f32.gmra.mrb[0].mxu0 %v1115
  %v1442 = vpop.f32.mrb[0].mxu0
  %v1443 = vadd.f32 %v1006, %v1442
  %v1444 = vpop.f32.mrb[0].mxu0
  %1445 = vmatprep.mubr.f32.mxu0 0.0
  %1446 = vmatmul.mubr.f32.gmra.mrb[0].mxu0 %v1118
  %v1447 = vpop.f32.mrb[0].mxu0
  %v1448 = vadd.f32 %v1006, %v1447
  %v1449 = vpop.f32.mrb[0].mxu0
  %1450 = vmatprep.mubr.f32.mxu0 0.0
  %1451 = vmatmul.mubr.f32.gmra.mrb[0].mxu0 %v1121
  %v1452 = vpop.f32.mrb[0].mxu0
  %v1453 = vadd.f32 %v1006, %v1452
  %v1454 = vpop.f32.mrb[0].mxu0
  %1455 = vmatprep.mubr.f32.mxu0 0.0
  %1456 = vmatmul.mubr.f32.gmra.mrb[0].mxu0 %v1124
  %v1457 = vpop.f32.mrb[0].mxu0
  %v1458 = vadd.f32 %v1006, %v1457
  %v1459 = vpop.f32.mrb[0].mxu0
  %1460 = vmatprep.mubr.f32.mxu0 0.0
  %1461 = vmatmul.mubr.f32.gmra.mrb[0].mxu0 %v1127
  %v1462 = vpop.f32.mrb[0].mxu0
  %v1463 = vadd.f32 %v1006, %v1462
  %v1464 = vpop.f32.mrb[0].mxu0
  %1465 = vmatprep.mubr.f32.mxu0 0.0
  %1466 = vmatmul.mubr.f32.gmra.mrb[0].mxu0 %v1130
  %v1467 = vpop.f32.mrb[0].mxu0
  %v1468 = vadd.f32 %v1006, %v1467
  %v1469 = vpop.f32.mrb[0].mxu0
  %1470 = vmatprep.mubr.f32.mxu0 0.0
  %1471 = vmatmul.mubr.f32.gmra.mrb[0].mxu0 %v1133
  %v1472 = vpop.f32.mrb[0].mxu0
  %v1473 = vadd.f32 %v1006, %v1472
  %v1474 = vpop.f32.mrb[0].mxu0
  %1475 = vmatprep.mubr.f32.mxu0 0.0
  %1476 = vmatmul.mubr.f32.gmra.mrb[0].mxu0 %v1136
  %v1477 = vpop.f32.mrb[0].mxu0
  %v1478 = vadd.f32 %v1006, %v1477
  %v1479 = vpop.f32.mrb[0].mxu0
  %1480 = vmatprep.mubr.f32.mxu0 0.0
  %1481 = vmatmul.mubr.f32.gmra.mrb[0].mxu0 %v1139
  %v1482 = vpop.f32.mrb[0].mxu0
  %v1483 = vadd.f32 %v1006, %v1482
  %v1484 = vpop.f32.mrb[0].mxu0
  %1485 = vmatprep.mubr.f32.mxu0 0.0
  %1486 = vmatmul.mubr.f32.gmra.mrb[0].mxu0 %v1142
  %v1487 = vpop.f32.mrb[0].mxu0
  %v1488 = vadd.f32 %v1006, %v1487
  %v1489 = vpop.f32.mrb[0].mxu0
  %1490 = vmatprep.mubr.f32.mxu0 0.0
  %1491 = vmatmul.mubr.f32.gmra.mrb[0].mxu0 %v1145
  %v1492 = vpop.f32.mrb[0].mxu0
  %v1493 = vadd.f32 %v1006, %v1492
  %v1494 = vpop.f32.mrb[0].mxu0
  %1495 = vmatprep.mubr.f32.mxu0 0.0
  %1496 = vmatmul.mubr.f32.gmra.mrb[0].mxu0 %v1148
  %v1497 = vpop.f32.mrb[0].mxu0
  %v1498 = vadd.f32 %v1006, %v1497
  %v1499 = vpop.f32.mrb[0].mxu0
  %1500 = vmatprep.mubr.f32.mxu0 0.0
  %1501 = vmatmul.mubr.f32.gmra.mrb[0].mxu0 %v1151
  %v1502 = vpop.f32.mrb[0].mxu0
  %v1503 = vadd.f32 %v1006, %v1502
  %v1504 = vpop.f32.mrb[0].mxu0
  %1505 = vmatprep.mubr.f32.mxu0 0.0
  %1506 = vmatmul.mubr.f32.gmra.mrb[0].mxu0 %v1154
  %v1507 = vpop.f32.mrb[0].mxu0
  %v1508 = vadd.f32 %v1006, %v1507
  %v1509 = vpop.f32.mrb[0].mxu0
  %1510 = vmatprep.mubr.f32.mxu0 0.0
  %1511 = vmatmul.mubr.f32.gmra.mrb[0].mxu0 %v1157
  %v1512 = vpop.f32.mrb[0].mxu0
  %v1513 = vadd.f32 %v1006, %v1512
  %v1514 = vpop.f32.mrb[0].mxu0
  %1515 = vmatprep.mubr.f32.mxu0 0.0
  %1516 = vmatmul.mubr.f32.gmra.mrb[0].mxu0 %v1160
  %v1517 = vpop.f32.mrb[0].mxu0
  %v1518 = vadd.f32 %v1006, %v1517
  %v1519 = vpop.f32.mrb[0].mxu0
  %1520 = vmatprep.mubr.f32.mxu0 0.0
  %1521 = vmatmul.mubr.f32.gmra.mrb[0].mxu0 %v1163
  %v1522 = vpop.f32.mrb[0].mxu0
  %v1523 = vadd.f32 %v1006, %v1522
  %v1524 = vpop.f32.mrb[0].mxu0
  %1525 = vmatprep.mubr.f32.mxu0 0.0
  %1526 = vmatmul.mubr.f32.gmra.mrb[0].mxu0 %v1166
  %v1527 = vpop.f32.mrb[0].mxu0
  %v1528 = vadd.f32 %v1006, %v1527
  %v1529 = vpop.f32.mrb[0].mxu0
  %1530 = vmatprep.mubr.f32.mxu0 0.0
  %1531 = vmatmul.mubr.f32.gmra.mrb[0].mxu0 %v1169
  %v1532 = vpop.f32.mrb[0].mxu0
  %v1533 = vadd.f32 %v1006, %v1532
  %v1534 = vpop.f32.mrb[0].mxu0
  %1535 = vmatprep.mubr.f32.mxu0 0.0
  %1536 = vmatmul.mubr.f32.gmra.mrb[0].mxu0 %v1172
  %v1537 = vpop.f32.mrb[0].mxu0
  %v1538 = vadd.f32 %v1006, %v1537
  %v1539 = vpop.f32.mrb[0].mxu0
  %1540 = vmatprep.mubr.f32.mxu0 0.0
  %1541 = vmatmul.mubr.f32.gmra.mrb[0].mxu0 %v1175
  %v1542 = vpop.f32.mrb[0].mxu0
  %v1543 = vadd.f32 %v1006, %v1542
  %v1544 = vpop.f32.mrb[0].mxu0
  %1545 = vmatprep.mubr.f32.mxu0 0.0
  %1546 = vmatmul.mubr.f32.gmra.mrb[0].mxu0 %v1178
  %v1547 = vpop.f32.mrb[0].mxu0
  %v1548 = vadd.f32 %v1006, %v1547
  %v1549 = vpop.f32.mrb[0].mxu0
  %1550 = vmatprep.mubr.f32.mxu0 0.0
  %1551 = vmatmul.mubr.f32.gmra.mrb[0].mxu0 %v1181
  %v1552 = vpop.f32.mrb[0].mxu0
  %v1553 = vadd.f32 %v1006, %v1552
  %v1554 = vpop.f32.mrb[0].mxu0
  %1555 = vmatprep.mubr.f32.mxu0 0.0
  %1556 = vmatmul.mubr.f32.gmra.mrb[0].mxu0 %v1184
  %v1557 = vpop.f32.mrb[0].mxu0
  %v1558 = vadd.f32 %v1006, %v1557
  %v1559 = vpop.f32.mrb[0].mxu0
  %1560 = vmatprep.mubr.f32.mxu0 0.0
  %1561 = vmatmul.mubr.f32.gmra.mrb[0].mxu0 %v1187
  %v1562 = vpop.f32.mrb[0].mxu0
  %v1563 = vadd.f32 %v1006, %v1562
  %v1564 = vpop.f32.mrb[0].mxu0
  %1565 = vmatprep.mubr.f32.mxu0 0.0
  %1566 = vmatmul.mubr.f32.gmra.mrb[0].mxu0 %v1190
  %v1567 = vpop.f32.mrb[0].mxu0
  %v1568 = vadd.f32 %v1006, %v1567
  %v1569 = vpop.f32.mrb[0].mxu0
  %1570 = vmatprep.mubr.f32.mxu0 0.0
  %1571 = vmatmul.mubr.f32.gmra.mrb[0].mxu0 %v1193
  %v1572 = vpop.f32.mrb[0].mxu0
  %v1573 = vadd.f32 %v1006, %v1572
  %v1574 = vpop.f32.mrb[0].mxu0
  %1575 = vmatprep.mubr.f32.mxu0 0.0
  %1576 = vmatmul.mubr.f32.gmra.mrb[0].mxu0 %v1196
  %v1577 = vpop.f32.mrb[0].mxu0
  %v1578 = vadd.f32 %v1006, %v1577
  %v1579 = vpop.f32.mrb[0].mxu0
  %1580 = vmatprep.mubr.f32.mxu0 0.0
  %1581 = vmatmul.mubr.f32.gmra.mrb[0].mxu0 %v1199
  %v1582 = vpop.f32.mrb[0].mxu0
  %v1583 = vadd.f32 %v1006, %v1582
  %v1584 = vpop.f32.mrb[0].mxu0
  %1585 = vdwg.mxu0
  %v1586 = vmul.f32 %v1268, 0.5
  %v1587 = vmul.f32 %v1273, 0.5
  %v1588 = vmul.f32 %v1278, 0.5
  %v1589 = vmul.f32 %v1283, 0.5
  %v1590 = vmul.f32 %v1288, 0.5
  %v1591 = vmul.f32 %v1293, 0.5
  %v1592 = vmul.f32 %v1298, 0.5
  %v1593 = vmul.f32 %v1303, 0.5
  %v1594 = vmul.f32 %v1308, 0.5
  %v1595 = vmul.f32 %v1313, 0.5
  %v1596 = vmul.f32 %v1318, 0.5
  %v1597 = vmul.f32 %v1323, 0.5
  %v1598 = vmul.f32 %v1328, 0.5
  %v1599 = vmul.f32 %v1333, 0.5
  %v1600 = vmul.f32 %v1338, 0.5
  %v1601 = vmul.f32 %v1343, 0.5
  %v1602 = vmul.f32 %v1348, 0.5
  %v1603 = vmul.f32 %v1353, 0.5
  %v1604 = vmul.f32 %v1358, 0.5
  %v1605 = vmul.f32 %v1363, 0.5
  %v1606 = vmul.f32 %v1368, 0.5
  %v1607 = vmul.f32 %v1373, 0.5
  %v1608 = vmul.f32 %v1378, 0.5
  %v1609 = vmul.f32 %v1383, 0.5
  %v1610 = vmul.f32 %v1388, 0.5
  %v1611 = vmul.f32 %v1393, 0.5
  %v1612 = vmul.f32 %v1398, 0.5
  %v1613 = vmul.f32 %v1403, 0.5
  %v1614 = vmul.f32 %v1408, 0.5
  %v1615 = vmul.f32 %v1413, 0.5
  %v1616 = vmul.f32 %v1418, 0.5
  %v1617 = vmul.f32 %v1423, 0.5
  %v1618 = vmul.f32 %v1428, 0.5
  %v1619 = vmul.f32 %v1433, 0.5
  %v1620 = vmul.f32 %v1438, 0.5
  %v1621 = vmul.f32 %v1443, 0.5
  %v1622 = vmul.f32 %v1448, 0.5
  %v1623 = vmul.f32 %v1453, 0.5
  %v1624 = vmul.f32 %v1458, 0.5
  %v1625 = vmul.f32 %v1463, 0.5
  %v1626 = vmul.f32 %v1468, 0.5
  %v1627 = vmul.f32 %v1473, 0.5
  %v1628 = vmul.f32 %v1478, 0.5
  %v1629 = vmul.f32 %v1483, 0.5
  %v1630 = vmul.f32 %v1488, 0.5
  %v1631 = vmul.f32 %v1493, 0.5
  %v1632 = vmul.f32 %v1498, 0.5
  %v1633 = vmul.f32 %v1503, 0.5
  %v1634 = vmul.f32 %v1508, 0.5
  %v1635 = vmul.f32 %v1513, 0.5
  %v1636 = vmul.f32 %v1518, 0.5
  %v1637 = vmul.f32 %v1523, 0.5
  %v1638 = vmul.f32 %v1528, 0.5
  %v1639 = vmul.f32 %v1533, 0.5
  %v1640 = vmul.f32 %v1538, 0.5
  %v1641 = vmul.f32 %v1543, 0.5
  %v1642 = vmul.f32 %v1548, 0.5
  %v1643 = vmul.f32 %v1553, 0.5
  %v1644 = vmul.f32 %v1558, 0.5
  %v1645 = vmul.f32 %v1563, 0.5
  %v1646 = vmul.f32 %v1568, 0.5
  %v1647 = vmul.f32 %v1573, 0.5
  %v1648 = vmul.f32 %v1578, 0.5
  %v1649 = vmul.f32 %v1583, 0.5
  %v1650 = vmul.f32 %v1268, 0.70710677
  %v1651 = vmul.f32 %v1273, 0.70710677
  %v1652 = vmul.f32 %v1278, 0.70710677
  %v1653 = vmul.f32 %v1283, 0.70710677
  %v1654 = vmul.f32 %v1288, 0.70710677
  %v1655 = vmul.f32 %v1293, 0.70710677
  %v1656 = vmul.f32 %v1298, 0.70710677
  %v1657 = vmul.f32 %v1303, 0.70710677
  %v1658 = vmul.f32 %v1308, 0.70710677
  %v1659 = vmul.f32 %v1313, 0.70710677
  %v1660 = vmul.f32 %v1318, 0.70710677
  %v1661 = vmul.f32 %v1323, 0.70710677
  %v1662 = vmul.f32 %v1328, 0.70710677
  %v1663 = vmul.f32 %v1333, 0.70710677
  %v1664 = vmul.f32 %v1338, 0.70710677
  %v1665 = vmul.f32 %v1343, 0.70710677
  %v1666 = vmul.f32 %v1348, 0.70710677
  %v1667 = vmul.f32 %v1353, 0.70710677
  %v1668 = vmul.f32 %v1358, 0.70710677
  %v1669 = vmul.f32 %v1363, 0.70710677
  %v1670 = vmul.f32 %v1368, 0.70710677
  %v1671 = vmul.f32 %v1373, 0.70710677
  %v1672 = vmul.f32 %v1378, 0.70710677
  %v1673 = vmul.f32 %v1383, 0.70710677
  %v1674 = vmul.f32 %v1388, 0.70710677
  %v1675 = vmul.f32 %v1393, 0.70710677
  %v1676 = vmul.f32 %v1398, 0.70710677
  %v1677 = vmul.f32 %v1403, 0.70710677
  %v1678 = vmul.f32 %v1408, 0.70710677
  %v1679 = vmul.f32 %v1413, 0.70710677
  %v1680 = vmul.f32 %v1418, 0.70710677
  %v1681 = vmul.f32 %v1423, 0.70710677
  %v1682 = vmul.f32 %v1428, 0.70710677
  %v1683 = vmul.f32 %v1433, 0.70710677
  %v1684 = vmul.f32 %v1438, 0.70710677
  %v1685 = vmul.f32 %v1443, 0.70710677
  %v1686 = vmul.f32 %v1448, 0.70710677
  %v1687 = vmul.f32 %v1453, 0.70710677
  %v1688 = vmul.f32 %v1458, 0.70710677
  %v1689 = vmul.f32 %v1463, 0.70710677
  %v1690 = vmul.f32 %v1468, 0.70710677
  %v1691 = vmul.f32 %v1473, 0.70710677
  %v1692 = vmul.f32 %v1478, 0.70710677
  %v1693 = vmul.f32 %v1483, 0.70710677
  %v1694 = vmul.f32 %v1488, 0.70710677
  %v1695 = vmul.f32 %v1493, 0.70710677
  %v1696 = vmul.f32 %v1498, 0.70710677
  %v1697 = vmul.f32 %v1503, 0.70710677
  %v1698 = vmul.f32 %v1508, 0.70710677
  %v1699 = vmul.f32 %v1513, 0.70710677
  %v1700 = vmul.f32 %v1518, 0.70710677
  %v1701 = vmul.f32 %v1523, 0.70710677
  %v1702 = vmul.f32 %v1528, 0.70710677
  %v1703 = vmul.f32 %v1533, 0.70710677
  %v1704 = vmul.f32 %v1538, 0.70710677
  %v1705 = vmul.f32 %v1543, 0.70710677
  %v1706 = vmul.f32 %v1548, 0.70710677
  %v1707 = vmul.f32 %v1553, 0.70710677
  %v1708 = vmul.f32 %v1558, 0.70710677
  %v1709 = vmul.f32 %v1563, 0.70710677
  %v1710 = vmul.f32 %v1568, 0.70710677
  %v1711 = vmul.f32 %v1573, 0.70710677
  %v1712 = vmul.f32 %v1578, 0.70710677
  %v1713 = vmul.f32 %v1583, 0.70710677
  %v1714 = verf.f32.pop %v1650
  %v1715 = verf.f32.pop %v1651
  %v1716 = verf.f32.pop %v1652
  %v1717 = verf.f32.pop %v1653
  %v1718 = verf.f32.pop %v1654
  %v1719 = verf.f32.pop %v1655
  %v1720 = verf.f32.pop %v1656
  %v1721 = verf.f32.pop %v1657
  %v1722 = verf.f32.pop %v1658
  %v1723 = verf.f32.pop %v1659
  %v1724 = verf.f32.pop %v1660
  %v1725 = verf.f32.pop %v1661
  %v1726 = verf.f32.pop %v1662
  %v1727 = verf.f32.pop %v1663
  %v1728 = verf.f32.pop %v1664
  %v1729 = verf.f32.pop %v1665
  %v1730 = verf.f32.pop %v1666
  %v1731 = verf.f32.pop %v1667
  %v1732 = verf.f32.pop %v1668
  %v1733 = verf.f32.pop %v1669
  %v1734 = verf.f32.pop %v1670
  %v1735 = verf.f32.pop %v1671
  %v1736 = verf.f32.pop %v1672
  %v1737 = verf.f32.pop %v1673
  %v1738 = verf.f32.pop %v1674
  %v1739 = verf.f32.pop %v1675
  %v1740 = verf.f32.pop %v1676
  %v1741 = verf.f32.pop %v1677
  %v1742 = verf.f32.pop %v1678
  %v1743 = verf.f32.pop %v1679
  %v1744 = verf.f32.pop %v1680
  %v1745 = verf.f32.pop %v1681
  %v1746 = verf.f32.pop %v1682
  %v1747 = verf.f32.pop %v1683
  %v1748 = verf.f32.pop %v1684
  %v1749 = verf.f32.pop %v1685
  %v1750 = verf.f32.pop %v1686
  %v1751 = verf.f32.pop %v1687
  %v1752 = verf.f32.pop %v1688
  %v1753 = verf.f32.pop %v1689
  %v1754 = verf.f32.pop %v1690
  %v1755 = verf.f32.pop %v1691
  %v1756 = verf.f32.pop %v1692
  %v1757 = verf.f32.pop %v1693
  %v1758 = verf.f32.pop %v1694
  %v1759 = verf.f32.pop %v1695
  %v1760 = verf.f32.pop %v1696
  %v1761 = verf.f32.pop %v1697
  %v1762 = verf.f32.pop %v1698
  %v1763 = verf.f32.pop %v1699
  %v1764 = verf.f32.pop %v1700
  %v1765 = verf.f32.pop %v1701
  %v1766 = verf.f32.pop %v1702
  %v1767 = verf.f32.pop %v1703
  %v1768 = verf.f32.pop %v1704
  %v1769 = verf.f32.pop %v1705
  %v1770 = verf.f32.pop %v1706
  %v1771 = verf.f32.pop %v1707
  %v1772 = verf.f32.pop %v1708
  %v1773 = verf.f32.pop %v1709
  %v1774 = verf.f32.pop %v1710
  %v1775 = verf.f32.pop %v1711
  %v1776 = verf.f32.pop %v1712
  %v1777 = verf.f32.pop %v1713
  %v1778 = vadd.f32 %v1714, 1.0
  %v1779 = vadd.f32 %v1715, 1.0
  %v1780 = vadd.f32 %v1716, 1.0
  %v1781 = vadd.f32 %v1717, 1.0
  %v1782 = vadd.f32 %v1718, 1.0
  %v1783 = vadd.f32 %v1719, 1.0
  %v1784 = vadd.f32 %v1720, 1.0
  %v1785 = vadd.f32 %v1721, 1.0
  %v1786 = vadd.f32 %v1722, 1.0
  %v1787 = vadd.f32 %v1723, 1.0
  %v1788 = vadd.f32 %v1724, 1.0
  %v1789 = vadd.f32 %v1725, 1.0
  %v1790 = vadd.f32 %v1726, 1.0
  %v1791 = vadd.f32 %v1727, 1.0
  %v1792 = vadd.f32 %v1728, 1.0
  %v1793 = vadd.f32 %v1729, 1.0
  %v1794 = vadd.f32 %v1730, 1.0
  %v1795 = vadd.f32 %v1731, 1.0
  %v1796 = vadd.f32 %v1732, 1.0
  %v1797 = vadd.f32 %v1733, 1.0
  %v1798 = vadd.f32 %v1734, 1.0
  %v1799 = vadd.f32 %v1735, 1.0
  %v1800 = vadd.f32 %v1736, 1.0
  %v1801 = vadd.f32 %v1737, 1.0
  %v1802 = vadd.f32 %v1738, 1.0
  %v1803 = vadd.f32 %v1739, 1.0
  %v1804 = vadd.f32 %v1740, 1.0
  %v1805 = vadd.f32 %v1741, 1.0
  %v1806 = vadd.f32 %v1742, 1.0
  %v1807 = vadd.f32 %v1743, 1.0
  %v1808 = vadd.f32 %v1744, 1.0
  %v1809 = vadd.f32 %v1745, 1.0
  %v1810 = vadd.f32 %v1746, 1.0
  %v1811 = vadd.f32 %v1747, 1.0
  %v1812 = vadd.f32 %v1748, 1.0
  %v1813 = vadd.f32 %v1749, 1.0
  %v1814 = vadd.f32 %v1750, 1.0
  %v1815 = vadd.f32 %v1751, 1.0
  %v1816 = vadd.f32 %v1752, 1.0
  %v1817 = vadd.f32 %v1753, 1.0
  %v1818 = vadd.f32 %v1754, 1.0
  %v1819 = vadd.f32 %v1755, 1.0
  %v1820 = vadd.f32 %v1756, 1.0
  %v1821 = vadd.f32 %v1757, 1.0
  %v1822 = vadd.f32 %v1758, 1.0
  %v1823 = vadd.f32 %v1759, 1.0
  %v1824 = vadd.f32 %v1760, 1.0
  %v1825 = vadd.f32 %v1761, 1.0
  %v1826 = vadd.f32 %v1762, 1.0
  %v1827 = vadd.f32 %v1763, 1.0
  %v1828 = vadd.f32 %v1764, 1.0
  %v1829 = vadd.f32 %v1765, 1.0
  %v1830 = vadd.f32 %v1766, 1.0
  %v1831 = vadd.f32 %v1767, 1.0
  %v1832 = vadd.f32 %v1768, 1.0
  %v1833 = vadd.f32 %v1769, 1.0
  %v1834 = vadd.f32 %v1770, 1.0
  %v1835 = vadd.f32 %v1771, 1.0
  %v1836 = vadd.f32 %v1772, 1.0
  %v1837 = vadd.f32 %v1773, 1.0
  %v1838 = vadd.f32 %v1774, 1.0
  %v1839 = vadd.f32 %v1775, 1.0
  %v1840 = vadd.f32 %v1776, 1.0
  %v1841 = vadd.f32 %v1777, 1.0
  %v1842 = vmul.f32 %v1586, %v1778
  %v1843 = vmul.f32 %v1587, %v1779
  %v1844 = vmul.f32 %v1588, %v1780
  %v1845 = vmul.f32 %v1589, %v1781
  %v1846 = vmul.f32 %v1590, %v1782
  %v1847 = vmul.f32 %v1591, %v1783
  %v1848 = vmul.f32 %v1592, %v1784
  %v1849 = vmul.f32 %v1593, %v1785
  %v1850 = vmul.f32 %v1594, %v1786
  %v1851 = vmul.f32 %v1595, %v1787
  %v1852 = vmul.f32 %v1596, %v1788
  %v1853 = vmul.f32 %v1597, %v1789
  %v1854 = vmul.f32 %v1598, %v1790
  %v1855 = vmul.f32 %v1599, %v1791
  %v1856 = vmul.f32 %v1600, %v1792
  %v1857 = vmul.f32 %v1601, %v1793
  %v1858 = vmul.f32 %v1602, %v1794
  %v1859 = vmul.f32 %v1603, %v1795
  %v1860 = vmul.f32 %v1604, %v1796
  %v1861 = vmul.f32 %v1605, %v1797
  %v1862 = vmul.f32 %v1606, %v1798
  %v1863 = vmul.f32 %v1607, %v1799
  %v1864 = vmul.f32 %v1608, %v1800
  %v1865 = vmul.f32 %v1609, %v1801
  %v1866 = vmul.f32 %v1610, %v1802
  %v1867 = vmul.f32 %v1611, %v1803
  %v1868 = vmul.f32 %v1612, %v1804
  %v1869 = vmul.f32 %v1613, %v1805
  %v1870 = vmul.f32 %v1614, %v1806
  %v1871 = vmul.f32 %v1615, %v1807
  %v1872 = vmul.f32 %v1616, %v1808
  %v1873 = vmul.f32 %v1617, %v1809
  %v1874 = vmul.f32 %v1618, %v1810
  %v1875 = vmul.f32 %v1619, %v1811
  %v1876 = vmul.f32 %v1620, %v1812
  %v1877 = vmul.f32 %v1621, %v1813
  %v1878 = vmul.f32 %v1622, %v1814
  %v1879 = vmul.f32 %v1623, %v1815
  %v1880 = vmul.f32 %v1624, %v1816
  %v1881 = vmul.f32 %v1625, %v1817
  %v1882 = vmul.f32 %v1626, %v1818
  %v1883 = vmul.f32 %v1627, %v1819
  %v1884 = vmul.f32 %v1628, %v1820
  %v1885 = vmul.f32 %v1629, %v1821
  %v1886 = vmul.f32 %v1630, %v1822
  %v1887 = vmul.f32 %v1631, %v1823
  %v1888 = vmul.f32 %v1632, %v1824
  %v1889 = vmul.f32 %v1633, %v1825
  %v1890 = vmul.f32 %v1634, %v1826
  %v1891 = vmul.f32 %v1635, %v1827
  %v1892 = vmul.f32 %v1636, %v1828
  %v1893 = vmul.f32 %v1637, %v1829
  %v1894 = vmul.f32 %v1638, %v1830
  %v1895 = vmul.f32 %v1639, %v1831
  %v1896 = vmul.f32 %v1640, %v1832
  %v1897 = vmul.f32 %v1641, %v1833
  %v1898 = vmul.f32 %v1642, %v1834
  %v1899 = vmul.f32 %v1643, %v1835
  %v1900 = vmul.f32 %v1644, %v1836
  %v1901 = vmul.f32 %v1645, %v1837
  %v1902 = vmul.f32 %v1646, %v1838
  %v1903 = vmul.f32 %v1647, %v1839
  %v1904 = vmul.f32 %v1648, %v1840
  %v1905 = vmul.f32 %v1649, %v1841
  %v1906 = vld [vmem:[%s5] sm:$0xff]
  %v1907 = vld [vmem:[%s5 + $0x8] sm:$0xff]
  %v1908 = vld [vmem:[%s5 + $0x10] sm:$0xff]
  %v1909 = vld [vmem:[%s5 + $0x18] sm:$0xff]
  %v1910 = vld [vmem:[%s6] sm:$0x1]
  %v1912 = vlaneseq
  %v1913 = vshrl.u32 %v1912, 7
  %v1914 = vsub.s32 0, %v1913
  %v1915 = vrot.slane %v1910, %v1914
  %v1918 = vsel %vm1008, %v1842, 0
  %v1921 = vsel %vm1008, %v1843, 0
  %v1924 = vsel %vm1008, %v1844, 0
  %v1927 = vsel %vm1008, %v1845, 0
  %v1930 = vsel %vm1008, %v1846, 0
  %v1933 = vsel %vm1008, %v1847, 0
  %v1936 = vsel %vm1008, %v1848, 0
  %v1939 = vsel %vm1008, %v1849, 0
  %v1942 = vsel %vm1008, %v1850, 0
  %v1945 = vsel %vm1008, %v1851, 0
  %v1948 = vsel %vm1008, %v1852, 0
  %v1951 = vsel %vm1008, %v1853, 0
  %v1954 = vsel %vm1008, %v1854, 0
  %v1957 = vsel %vm1008, %v1855, 0
  %v1960 = vsel %vm1008, %v1856, 0
  %v1963 = vsel %vm1008, %v1857, 0
  %v1966 = vsel %vm1008, %v1858, 0
  %v1969 = vsel %vm1008, %v1859, 0
  %v1972 = vsel %vm1008, %v1860, 0
  %v1975 = vsel %vm1008, %v1861, 0
  %v1978 = vsel %vm1008, %v1862, 0
  %v1981 = vsel %vm1008, %v1863, 0
  %v1984 = vsel %vm1008, %v1864, 0
  %v1987 = vsel %vm1008, %v1865, 0
  %v1990 = vsel %vm1008, %v1866, 0
  %v1993 = vsel %vm1008, %v1867, 0
  %v1996 = vsel %vm1008, %v1868, 0
  %v1999 = vsel %vm1008, %v1869, 0
  %v2002 = vsel %vm1008, %v1870, 0
  %v2005 = vsel %vm1008, %v1871, 0
  %v2008 = vsel %vm1008, %v1872, 0
  %v2011 = vsel %vm1008, %v1873, 0
  %v2014 = vsel %vm1008, %v1874, 0
  %v2017 = vsel %vm1008, %v1875, 0
  %v2020 = vsel %vm1008, %v1876, 0
  %v2023 = vsel %vm1008, %v1877, 0
  %v2026 = vsel %vm1008, %v1878, 0
  %v2029 = vsel %vm1008, %v1879, 0
  %v2032 = vsel %vm1008, %v1880, 0
  %v2035 = vsel %vm1008, %v1881, 0
  %v2038 = vsel %vm1008, %v1882, 0
  %v2041 = vsel %vm1008, %v1883, 0
  %v2044 = vsel %vm1008, %v1884, 0
  %v2047 = vsel %vm1008, %v1885, 0
  %v2050 = vsel %vm1008, %v1886, 0
  %v2053 = vsel %vm1008, %v1887, 0
  %v2056 = vsel %vm1008, %v1888, 0
  %v2059 = vsel %vm1008, %v1889, 0
  %v2062 = vsel %vm1008, %v1890, 0
  %v2065 = vsel %vm1008, %v1891, 0
  %v2068 = vsel %vm1008, %v1892, 0
  %v2071 = vsel %vm1008, %v1893, 0
  %v2074 = vsel %vm1008, %v1894, 0
  %v2077 = vsel %vm1008, %v1895, 0
  %v2080 = vsel %vm1008, %v1896, 0
  %v2083 = vsel %vm1008, %v1897, 0
  %v2086 = vsel %vm1008, %v1898, 0
  %v2089 = vsel %vm1008, %v1899, 0
  %v2092 = vsel %vm1008, %v1900, 0
  %v2095 = vsel %vm1008, %v1901, 0
  %v2098 = vsel %vm1008, %v1902, 0
  %v2101 = vsel %vm1008, %v1903, 0
  %v2104 = vsel %vm1008, %v1904, 0
  %v2107 = vsel %vm1008, %v1905, 0
  %2109 = vmatprep.subr.mxu0 0.0
  %2110 = vmatpush1.msra.mxu0 %v1906
  %2111 = vmatprep.subr.mxu0 0.0
  %2112 = vmatpush1.msra.mxu0 %v1907
  %2113 = vmatprep.subr.mxu0 0.0
  %2114 = vmatpush1.msra.mxu0 %v1908
  %2115 = vmatprep.subr.mxu0 0.0
  %2116 = vmatpush1.msra.mxu0 %v1909
  %2117 = vmatprep.subr.mxu0 0.0
  %2118 = vmatpush1.msra.mxu0 0.0
  %2119 = vmatprep.subr.mxu0 0.0
  %2120 = vmatpush1.msra.mxu0 0.0
  %2121 = vmatprep.subr.mxu0 0.0
  %2122 = vmatpush1.msra.mxu0 0.0
  %2123 = vmatprep.subr.mxu0 0.0
  %2124 = vmatpush1.msra.mxu0 0.0
  %2125 = vmatprep.subr.mxu0 0.0
  %2126 = vmatpush1.msra.mxu0 0.0
  %2127 = vmatprep.subr.mxu0 0.0
  %2128 = vmatpush1.msra.mxu0 0.0
  %2129 = vmatprep.subr.mxu0 0.0
  %2130 = vmatpush1.msra.mxu0 0.0
  %2131 = vmatprep.subr.mxu0 0.0
  %2132 = vmatpush1.msra.mxu0 0.0
  %2133 = vmatprep.subr.mxu0 0.0
  %2134 = vmatpush1.msra.mxu0 0.0
  %2135 = vmatprep.subr.mxu0 0.0
  %2136 = vmatpush1.msra.mxu0 0.0
  %2137 = vmatprep.subr.mxu0 0.0
  %2138 = vmatpush1.msra.mxu0 0.0
  %2139 = vmatprep.subr.mxu0 0.0
  %2140 = vmatpush1.msra.mxu0 0.0
  %2141 = vmatprep.subr.mxu0 0.0
  %2142 = vmatpush1.msra.mxu0 0.0
  %2143 = vmatprep.subr.mxu0 0.0
  %2144 = vmatpush1.msra.mxu0 0.0
  %2145 = vmatprep.subr.mxu0 0.0
  %2146 = vmatpush1.msra.mxu0 0.0
  %2147 = vmatprep.subr.mxu0 0.0
  %2148 = vmatpush1.msra.mxu0 0.0
  %2149 = vmatprep.subr.mxu0 0.0
  %2150 = vmatpush1.msra.mxu0 0.0
  %2151 = vmatprep.subr.mxu0 0.0
  %2152 = vmatpush1.msra.mxu0 0.0
  %2153 = vmatprep.subr.mxu0 0.0
  %2154 = vmatpush1.msra.mxu0 0.0
  %2155 = vmatprep.subr.mxu0 0.0
  %2156 = vmatpush1.msra.mxu0 0.0
  %2157 = vmatprep.subr.mxu0 0.0
  %2158 = vmatpush1.msra.mxu0 0.0
  %2159 = vmatprep.subr.mxu0 0.0
  %2160 = vmatpush1.msra.mxu0 0.0
  %2161 = vmatprep.subr.mxu0 0.0
  %2162 = vmatpush1.msra.mxu0 0.0
  %2163 = vmatprep.subr.mxu0 0.0
  %2164 = vmatpush1.msra.mxu0 0.0
  %2165 = vmatprep.subr.mxu0 0.0
  %2166 = vmatpush1.msra.mxu0 0.0
  %2167 = vmatprep.subr.mxu0 0.0
  %2168 = vmatpush1.msra.mxu0 0.0
  %2169 = vmatprep.subr.mxu0 0.0
  %2170 = vmatpush1.msra.mxu0 0.0
  %2171 = vmatprep.subr.mxu0 0.0
  %2172 = vmatpush1.msra.mxu0 0.0
  %2173 = vmatprep.mubr.f32.mxu0 0.0
  %2174 = vmatmul.mubr.f32.gmra.mrb[0].mxu0 %v1918
  %v2175 = vpop.f32.mrb[0].mxu0
  %v2176 = vadd.f32 %v1915, %v2175
  %v2177 = vpop.f32.mrb[0].mxu0
  %2178 = vmatprep.mubr.f32.mxu0 0.0
  %2179 = vmatmul.mubr.f32.gmra.mrb[0].mxu0 %v1921
  %v2180 = vpop.f32.mrb[0].mxu0
  %v2181 = vadd.f32 %v1915, %v2180
  %v2182 = vpop.f32.mrb[0].mxu0
  %2183 = vmatprep.mubr.f32.mxu0 0.0
  %2184 = vmatmul.mubr.f32.gmra.mrb[0].mxu0 %v1924
  %v2185 = vpop.f32.mrb[0].mxu0
  %v2186 = vadd.f32 %v1915, %v2185
  %v2187 = vpop.f32.mrb[0].mxu0
  %2188 = vmatprep.mubr.f32.mxu0 0.0
  %2189 = vmatmul.mubr.f32.gmra.mrb[0].mxu0 %v1927
  %v2190 = vpop.f32.mrb[0].mxu0
  %v2191 = vadd.f32 %v1915, %v2190
  %v2192 = vpop.f32.mrb[0].mxu0
  %2193 = vmatprep.mubr.f32.mxu0 0.0
  %2194 = vmatmul.mubr.f32.gmra.mrb[0].mxu0 %v1930
  %v2195 = vpop.f32.mrb[0].mxu0
  %v2196 = vadd.f32 %v1915, %v2195
  %v2197 = vpop.f32.mrb[0].mxu0
  %2198 = vmatprep.mubr.f32.mxu0 0.0
  %2199 = vmatmul.mubr.f32.gmra.mrb[0].mxu0 %v1933
  %v2200 = vpop.f32.mrb[0].mxu0
  %v2201 = vadd.f32 %v1915, %v2200
  %v2202 = vpop.f32.mrb[0].mxu0
  %2203 = vmatprep.mubr.f32.mxu0 0.0
  %2204 = vmatmul.mubr.f32.gmra.mrb[0].mxu0 %v1936
  %v2205 = vpop.f32.mrb[0].mxu0
  %v2206 = vadd.f32 %v1915, %v2205
  %v2207 = vpop.f32.mrb[0].mxu0
  %2208 = vmatprep.mubr.f32.mxu0 0.0
  %2209 = vmatmul.mubr.f32.gmra.mrb[0].mxu0 %v1939
  %v2210 = vpop.f32.mrb[0].mxu0
  %v2211 = vadd.f32 %v1915, %v2210
  %v2212 = vpop.f32.mrb[0].mxu0
  %2213 = vmatprep.mubr.f32.mxu0 0.0
  %2214 = vmatmul.mubr.f32.gmra.mrb[0].mxu0 %v1942
  %v2215 = vpop.f32.mrb[0].mxu0
  %v2216 = vadd.f32 %v1915, %v2215
  %v2217 = vpop.f32.mrb[0].mxu0
  %2218 = vmatprep.mubr.f32.mxu0 0.0
  %2219 = vmatmul.mubr.f32.gmra.mrb[0].mxu0 %v1945
  %v2220 = vpop.f32.mrb[0].mxu0
  %v2221 = vadd.f32 %v1915, %v2220
  %v2222 = vpop.f32.mrb[0].mxu0
  %2223 = vmatprep.mubr.f32.mxu0 0.0
  %2224 = vmatmul.mubr.f32.gmra.mrb[0].mxu0 %v1948
  %v2225 = vpop.f32.mrb[0].mxu0
  %v2226 = vadd.f32 %v1915, %v2225
  %v2227 = vpop.f32.mrb[0].mxu0
  %2228 = vmatprep.mubr.f32.mxu0 0.0
  %2229 = vmatmul.mubr.f32.gmra.mrb[0].mxu0 %v1951
  %v2230 = vpop.f32.mrb[0].mxu0
  %v2231 = vadd.f32 %v1915, %v2230
  %v2232 = vpop.f32.mrb[0].mxu0
  %2233 = vmatprep.mubr.f32.mxu0 0.0
  %2234 = vmatmul.mubr.f32.gmra.mrb[0].mxu0 %v1954
  %v2235 = vpop.f32.mrb[0].mxu0
  %v2236 = vadd.f32 %v1915, %v2235
  %v2237 = vpop.f32.mrb[0].mxu0
  %2238 = vmatprep.mubr.f32.mxu0 0.0
  %2239 = vmatmul.mubr.f32.gmra.mrb[0].mxu0 %v1957
  %v2240 = vpop.f32.mrb[0].mxu0
  %v2241 = vadd.f32 %v1915, %v2240
  %v2242 = vpop.f32.mrb[0].mxu0
  %2243 = vmatprep.mubr.f32.mxu0 0.0
  %2244 = vmatmul.mubr.f32.gmra.mrb[0].mxu0 %v1960
  %v2245 = vpop.f32.mrb[0].mxu0
  %v2246 = vadd.f32 %v1915, %v2245
  %v2247 = vpop.f32.mrb[0].mxu0
  %2248 = vmatprep.mubr.f32.mxu0 0.0
  %2249 = vmatmul.mubr.f32.gmra.mrb[0].mxu0 %v1963
  %v2250 = vpop.f32.mrb[0].mxu0
  %v2251 = vadd.f32 %v1915, %v2250
  %v2252 = vpop.f32.mrb[0].mxu0
  %2253 = vmatprep.mubr.f32.mxu0 0.0
  %2254 = vmatmul.mubr.f32.gmra.mrb[0].mxu0 %v1966
  %v2255 = vpop.f32.mrb[0].mxu0
  %v2256 = vadd.f32 %v1915, %v2255
  %v2257 = vpop.f32.mrb[0].mxu0
  %2258 = vmatprep.mubr.f32.mxu0 0.0
  %2259 = vmatmul.mubr.f32.gmra.mrb[0].mxu0 %v1969
  %v2260 = vpop.f32.mrb[0].mxu0
  %v2261 = vadd.f32 %v1915, %v2260
  %v2262 = vpop.f32.mrb[0].mxu0
  %2263 = vmatprep.mubr.f32.mxu0 0.0
  %2264 = vmatmul.mubr.f32.gmra.mrb[0].mxu0 %v1972
  %v2265 = vpop.f32.mrb[0].mxu0
  %v2266 = vadd.f32 %v1915, %v2265
  %v2267 = vpop.f32.mrb[0].mxu0
  %2268 = vmatprep.mubr.f32.mxu0 0.0
  %2269 = vmatmul.mubr.f32.gmra.mrb[0].mxu0 %v1975
  %v2270 = vpop.f32.mrb[0].mxu0
  %v2271 = vadd.f32 %v1915, %v2270
  %v2272 = vpop.f32.mrb[0].mxu0
  %2273 = vmatprep.mubr.f32.mxu0 0.0
  %2274 = vmatmul.mubr.f32.gmra.mrb[0].mxu0 %v1978
  %v2275 = vpop.f32.mrb[0].mxu0
  %v2276 = vadd.f32 %v1915, %v2275
  %v2277 = vpop.f32.mrb[0].mxu0
  %2278 = vmatprep.mubr.f32.mxu0 0.0
  %2279 = vmatmul.mubr.f32.gmra.mrb[0].mxu0 %v1981
  %v2280 = vpop.f32.mrb[0].mxu0
  %v2281 = vadd.f32 %v1915, %v2280
  %v2282 = vpop.f32.mrb[0].mxu0
  %2283 = vmatprep.mubr.f32.mxu0 0.0
  %2284 = vmatmul.mubr.f32.gmra.mrb[0].mxu0 %v1984
  %v2285 = vpop.f32.mrb[0].mxu0
  %v2286 = vadd.f32 %v1915, %v2285
  %v2287 = vpop.f32.mrb[0].mxu0
  %2288 = vmatprep.mubr.f32.mxu0 0.0
  %2289 = vmatmul.mubr.f32.gmra.mrb[0].mxu0 %v1987
  %v2290 = vpop.f32.mrb[0].mxu0
  %v2291 = vadd.f32 %v1915, %v2290
  %v2292 = vpop.f32.mrb[0].mxu0
  %2293 = vmatprep.mubr.f32.mxu0 0.0
  %2294 = vmatmul.mubr.f32.gmra.mrb[0].mxu0 %v1990
  %v2295 = vpop.f32.mrb[0].mxu0
  %v2296 = vadd.f32 %v1915, %v2295
  %v2297 = vpop.f32.mrb[0].mxu0
  %2298 = vmatprep.mubr.f32.mxu0 0.0
  %2299 = vmatmul.mubr.f32.gmra.mrb[0].mxu0 %v1993
  %v2300 = vpop.f32.mrb[0].mxu0
  %v2301 = vadd.f32 %v1915, %v2300
  %v2302 = vpop.f32.mrb[0].mxu0
  %2303 = vmatprep.mubr.f32.mxu0 0.0
  %2304 = vmatmul.mubr.f32.gmra.mrb[0].mxu0 %v1996
  %v2305 = vpop.f32.mrb[0].mxu0
  %v2306 = vadd.f32 %v1915, %v2305
  %v2307 = vpop.f32.mrb[0].mxu0
  %2308 = vmatprep.mubr.f32.mxu0 0.0
  %2309 = vmatmul.mubr.f32.gmra.mrb[0].mxu0 %v1999
  %v2310 = vpop.f32.mrb[0].mxu0
  %v2311 = vadd.f32 %v1915, %v2310
  %v2312 = vpop.f32.mrb[0].mxu0
  %2313 = vmatprep.mubr.f32.mxu0 0.0
  %2314 = vmatmul.mubr.f32.gmra.mrb[0].mxu0 %v2002
  %v2315 = vpop.f32.mrb[0].mxu0
  %v2316 = vadd.f32 %v1915, %v2315
  %v2317 = vpop.f32.mrb[0].mxu0
  %2318 = vmatprep.mubr.f32.mxu0 0.0
  %2319 = vmatmul.mubr.f32.gmra.mrb[0].mxu0 %v2005
  %v2320 = vpop.f32.mrb[0].mxu0
  %v2321 = vadd.f32 %v1915, %v2320
  %v2322 = vpop.f32.mrb[0].mxu0
  %2323 = vmatprep.mubr.f32.mxu0 0.0
  %2324 = vmatmul.mubr.f32.gmra.mrb[0].mxu0 %v2008
  %v2325 = vpop.f32.mrb[0].mxu0
  %v2326 = vadd.f32 %v1915, %v2325
  %v2327 = vpop.f32.mrb[0].mxu0
  %2328 = vmatprep.mubr.f32.mxu0 0.0
  %2329 = vmatmul.mubr.f32.gmra.mrb[0].mxu0 %v2011
  %v2330 = vpop.f32.mrb[0].mxu0
  %v2331 = vadd.f32 %v1915, %v2330
  %v2332 = vpop.f32.mrb[0].mxu0
  %2333 = vmatprep.mubr.f32.mxu0 0.0
  %2334 = vmatmul.mubr.f32.gmra.mrb[0].mxu0 %v2014
  %v2335 = vpop.f32.mrb[0].mxu0
  %v2336 = vadd.f32 %v1915, %v2335
  %v2337 = vpop.f32.mrb[0].mxu0
  %2338 = vmatprep.mubr.f32.mxu0 0.0
  %2339 = vmatmul.mubr.f32.gmra.mrb[0].mxu0 %v2017
  %v2340 = vpop.f32.mrb[0].mxu0
  %v2341 = vadd.f32 %v1915, %v2340
  %v2342 = vpop.f32.mrb[0].mxu0
  %2343 = vmatprep.mubr.f32.mxu0 0.0
  %2344 = vmatmul.mubr.f32.gmra.mrb[0].mxu0 %v2020
  %v2345 = vpop.f32.mrb[0].mxu0
  %v2346 = vadd.f32 %v1915, %v2345
  %v2347 = vpop.f32.mrb[0].mxu0
  %2348 = vmatprep.mubr.f32.mxu0 0.0
  %2349 = vmatmul.mubr.f32.gmra.mrb[0].mxu0 %v2023
  %v2350 = vpop.f32.mrb[0].mxu0
  %v2351 = vadd.f32 %v1915, %v2350
  %v2352 = vpop.f32.mrb[0].mxu0
  %2353 = vmatprep.mubr.f32.mxu0 0.0
  %2354 = vmatmul.mubr.f32.gmra.mrb[0].mxu0 %v2026
  %v2355 = vpop.f32.mrb[0].mxu0
  %v2356 = vadd.f32 %v1915, %v2355
  %v2357 = vpop.f32.mrb[0].mxu0
  %2358 = vmatprep.mubr.f32.mxu0 0.0
  %2359 = vmatmul.mubr.f32.gmra.mrb[0].mxu0 %v2029
  %v2360 = vpop.f32.mrb[0].mxu0
  %v2361 = vadd.f32 %v1915, %v2360
  %v2362 = vpop.f32.mrb[0].mxu0
  %2363 = vmatprep.mubr.f32.mxu0 0.0
  %2364 = vmatmul.mubr.f32.gmra.mrb[0].mxu0 %v2032
  %v2365 = vpop.f32.mrb[0].mxu0
  %v2366 = vadd.f32 %v1915, %v2365
  %v2367 = vpop.f32.mrb[0].mxu0
  %2368 = vmatprep.mubr.f32.mxu0 0.0
  %2369 = vmatmul.mubr.f32.gmra.mrb[0].mxu0 %v2035
  %v2370 = vpop.f32.mrb[0].mxu0
  %v2371 = vadd.f32 %v1915, %v2370
  %v2372 = vpop.f32.mrb[0].mxu0
  %2373 = vmatprep.mubr.f32.mxu0 0.0
  %2374 = vmatmul.mubr.f32.gmra.mrb[0].mxu0 %v2038
  %v2375 = vpop.f32.mrb[0].mxu0
  %v2376 = vadd.f32 %v1915, %v2375
  %v2377 = vpop.f32.mrb[0].mxu0
  %2378 = vmatprep.mubr.f32.mxu0 0.0
  %2379 = vmatmul.mubr.f32.gmra.mrb[0].mxu0 %v2041
  %v2380 = vpop.f32.mrb[0].mxu0
  %v2381 = vadd.f32 %v1915, %v2380
  %v2382 = vpop.f32.mrb[0].mxu0
  %2383 = vmatprep.mubr.f32.mxu0 0.0
  %2384 = vmatmul.mubr.f32.gmra.mrb[0].mxu0 %v2044
  %v2385 = vpop.f32.mrb[0].mxu0
  %v2386 = vadd.f32 %v1915, %v2385
  %v2387 = vpop.f32.mrb[0].mxu0
  %2388 = vmatprep.mubr.f32.mxu0 0.0
  %2389 = vmatmul.mubr.f32.gmra.mrb[0].mxu0 %v2047
  %v2390 = vpop.f32.mrb[0].mxu0
  %v2391 = vadd.f32 %v1915, %v2390
  %v2392 = vpop.f32.mrb[0].mxu0
  %2393 = vmatprep.mubr.f32.mxu0 0.0
  %2394 = vmatmul.mubr.f32.gmra.mrb[0].mxu0 %v2050
  %v2395 = vpop.f32.mrb[0].mxu0
  %v2396 = vadd.f32 %v1915, %v2395
  %v2397 = vpop.f32.mrb[0].mxu0
  %2398 = vmatprep.mubr.f32.mxu0 0.0
  %2399 = vmatmul.mubr.f32.gmra.mrb[0].mxu0 %v2053
  %v2400 = vpop.f32.mrb[0].mxu0
  %v2401 = vadd.f32 %v1915, %v2400
  %v2402 = vpop.f32.mrb[0].mxu0
  %2403 = vmatprep.mubr.f32.mxu0 0.0
  %2404 = vmatmul.mubr.f32.gmra.mrb[0].mxu0 %v2056
  %v2405 = vpop.f32.mrb[0].mxu0
  %v2406 = vadd.f32 %v1915, %v2405
  %v2407 = vpop.f32.mrb[0].mxu0
  %2408 = vmatprep.mubr.f32.mxu0 0.0
  %2409 = vmatmul.mubr.f32.gmra.mrb[0].mxu0 %v2059
  %v2410 = vpop.f32.mrb[0].mxu0
  %v2411 = vadd.f32 %v1915, %v2410
  %v2412 = vpop.f32.mrb[0].mxu0
  %2413 = vmatprep.mubr.f32.mxu0 0.0
  %2414 = vmatmul.mubr.f32.gmra.mrb[0].mxu0 %v2062
  %v2415 = vpop.f32.mrb[0].mxu0
  %v2416 = vadd.f32 %v1915, %v2415
  %v2417 = vpop.f32.mrb[0].mxu0
  %2418 = vmatprep.mubr.f32.mxu0 0.0
  %2419 = vmatmul.mubr.f32.gmra.mrb[0].mxu0 %v2065
  %v2420 = vpop.f32.mrb[0].mxu0
  %v2421 = vadd.f32 %v1915, %v2420
  %v2422 = vpop.f32.mrb[0].mxu0
  %2423 = vmatprep.mubr.f32.mxu0 0.0
  %2424 = vmatmul.mubr.f32.gmra.mrb[0].mxu0 %v2068
  %v2425 = vpop.f32.mrb[0].mxu0
  %v2426 = vadd.f32 %v1915, %v2425
  %v2427 = vpop.f32.mrb[0].mxu0
  %2428 = vmatprep.mubr.f32.mxu0 0.0
  %2429 = vmatmul.mubr.f32.gmra.mrb[0].mxu0 %v2071
  %v2430 = vpop.f32.mrb[0].mxu0
  %v2431 = vadd.f32 %v1915, %v2430
  %v2432 = vpop.f32.mrb[0].mxu0
  %2433 = vmatprep.mubr.f32.mxu0 0.0
  %2434 = vmatmul.mubr.f32.gmra.mrb[0].mxu0 %v2074
  %v2435 = vpop.f32.mrb[0].mxu0
  %v2436 = vadd.f32 %v1915, %v2435
  %v2437 = vpop.f32.mrb[0].mxu0
  %2438 = vmatprep.mubr.f32.mxu0 0.0
  %2439 = vmatmul.mubr.f32.gmra.mrb[0].mxu0 %v2077
  %v2440 = vpop.f32.mrb[0].mxu0
  %v2441 = vadd.f32 %v1915, %v2440
  %v2442 = vpop.f32.mrb[0].mxu0
  %2443 = vmatprep.mubr.f32.mxu0 0.0
  %2444 = vmatmul.mubr.f32.gmra.mrb[0].mxu0 %v2080
  %v2445 = vpop.f32.mrb[0].mxu0
  %v2446 = vadd.f32 %v1915, %v2445
  %v2447 = vpop.f32.mrb[0].mxu0
  %2448 = vmatprep.mubr.f32.mxu0 0.0
  %2449 = vmatmul.mubr.f32.gmra.mrb[0].mxu0 %v2083
  %v2450 = vpop.f32.mrb[0].mxu0
  %v2451 = vadd.f32 %v1915, %v2450
  %v2452 = vpop.f32.mrb[0].mxu0
  %2453 = vmatprep.mubr.f32.mxu0 0.0
  %2454 = vmatmul.mubr.f32.gmra.mrb[0].mxu0 %v2086
  %v2455 = vpop.f32.mrb[0].mxu0
  %v2456 = vadd.f32 %v1915, %v2455
  %v2457 = vpop.f32.mrb[0].mxu0
  %2458 = vmatprep.mubr.f32.mxu0 0.0
  %2459 = vmatmul.mubr.f32.gmra.mrb[0].mxu0 %v2089
  %v2460 = vpop.f32.mrb[0].mxu0
  %v2461 = vadd.f32 %v1915, %v2460
  %v2462 = vpop.f32.mrb[0].mxu0
  %2463 = vmatprep.mubr.f32.mxu0 0.0
  %2464 = vmatmul.mubr.f32.gmra.mrb[0].mxu0 %v2092
  %v2465 = vpop.f32.mrb[0].mxu0
  %v2466 = vadd.f32 %v1915, %v2465
  %v2467 = vpop.f32.mrb[0].mxu0
  %2468 = vmatprep.mubr.f32.mxu0 0.0
  %2469 = vmatmul.mubr.f32.gmra.mrb[0].mxu0 %v2095
  %v2470 = vpop.f32.mrb[0].mxu0
  %v2471 = vadd.f32 %v1915, %v2470
  %v2472 = vpop.f32.mrb[0].mxu0
  %2473 = vmatprep.mubr.f32.mxu0 0.0
  %2474 = vmatmul.mubr.f32.gmra.mrb[0].mxu0 %v2098
  %v2475 = vpop.f32.mrb[0].mxu0
  %v2476 = vadd.f32 %v1915, %v2475
  %v2477 = vpop.f32.mrb[0].mxu0
  %2478 = vmatprep.mubr.f32.mxu0 0.0
  %2479 = vmatmul.mubr.f32.gmra.mrb[0].mxu0 %v2101
  %v2480 = vpop.f32.mrb[0].mxu0
  %v2481 = vadd.f32 %v1915, %v2480
  %v2482 = vpop.f32.mrb[0].mxu0
  %2483 = vmatprep.mubr.f32.mxu0 0.0
  %2484 = vmatmul.mubr.f32.gmra.mrb[0].mxu0 %v2104
  %v2485 = vpop.f32.mrb[0].mxu0
  %v2486 = vadd.f32 %v1915, %v2485
  %v2487 = vpop.f32.mrb[0].mxu0
  %2488 = vmatprep.mubr.f32.mxu0 0.0
  %2489 = vmatmul.mubr.f32.gmra.mrb[0].mxu0 %v2107
  %v2490 = vpop.f32.mrb[0].mxu0
  %v2491 = vadd.f32 %v1915, %v2490
  %v2492 = vpop.f32.mrb[0].mxu0
  %2493 = vdwg.mxu0
  %vm2494 = vcmask 64512
  %2495 = vst.msk [vmem:[%s7] sm:$0xff] %vm2494, %v2176
  %2496 = vst.msk [vmem:[%s7 + $0x8] sm:$0xff] %vm2494, %v2181
  %2497 = vst.msk [vmem:[%s7 + $0x10] sm:$0xff] %vm2494, %v2186
  %2498 = vst.msk [vmem:[%s7 + $0x18] sm:$0xff] %vm2494, %v2191
  %2499 = vst.msk [vmem:[%s7 + $0x20] sm:$0xff] %vm2494, %v2196
  %2500 = vst.msk [vmem:[%s7 + $0x28] sm:$0xff] %vm2494, %v2201
  %2501 = vst.msk [vmem:[%s7 + $0x30] sm:$0xff] %vm2494, %v2206
  %2502 = vst.msk [vmem:[%s7 + $0x38] sm:$0xff] %vm2494, %v2211
  %2503 = vst.msk [vmem:[%s7 + $0x40] sm:$0xff] %vm2494, %v2216
  %2504 = vst.msk [vmem:[%s7 + $0x48] sm:$0xff] %vm2494, %v2221
  %2505 = vst.msk [vmem:[%s7 + $0x50] sm:$0xff] %vm2494, %v2226
  %2506 = vst.msk [vmem:[%s7 + $0x58] sm:$0xff] %vm2494, %v2231
  %2507 = vst.msk [vmem:[%s7 + $0x60] sm:$0xff] %vm2494, %v2236
  %2508 = vst.msk [vmem:[%s7 + $0x68] sm:$0xff] %vm2494, %v2241
  %2509 = vst.msk [vmem:[%s7 + $0x70] sm:$0xff] %vm2494, %v2246
  %2510 = vst.msk [vmem:[%s7 + $0x78] sm:$0xff] %vm2494, %v2251
  %2511 = vst.msk [vmem:[%s7 + $0x80] sm:$0xff] %vm2494, %v2256
  %2512 = vst.msk [vmem:[%s7 + $0x88] sm:$0xff] %vm2494, %v2261
  %2513 = vst.msk [vmem:[%s7 + $0x90] sm:$0xff] %vm2494, %v2266
  %2514 = vst.msk [vmem:[%s7 + $0x98] sm:$0xff] %vm2494, %v2271
  %2515 = vst.msk [vmem:[%s7 + $0xa0] sm:$0xff] %vm2494, %v2276
  %2516 = vst.msk [vmem:[%s7 + $0xa8] sm:$0xff] %vm2494, %v2281
  %2517 = vst.msk [vmem:[%s7 + $0xb0] sm:$0xff] %vm2494, %v2286
  %2518 = vst.msk [vmem:[%s7 + $0xb8] sm:$0xff] %vm2494, %v2291
  %2519 = vst.msk [vmem:[%s7 + $0xc0] sm:$0xff] %vm2494, %v2296
  %2520 = vst.msk [vmem:[%s7 + $0xc8] sm:$0xff] %vm2494, %v2301
  %2521 = vst.msk [vmem:[%s7 + $0xd0] sm:$0xff] %vm2494, %v2306
  %2522 = vst.msk [vmem:[%s7 + $0xd8] sm:$0xff] %vm2494, %v2311
  %2523 = vst.msk [vmem:[%s7 + $0xe0] sm:$0xff] %vm2494, %v2316
  %2524 = vst.msk [vmem:[%s7 + $0xe8] sm:$0xff] %vm2494, %v2321
  %2525 = vst.msk [vmem:[%s7 + $0xf0] sm:$0xff] %vm2494, %v2326
  %2526 = vst.msk [vmem:[%s7 + $0xf8] sm:$0xff] %vm2494, %v2331
  %2527 = vst.msk [vmem:[%s7 + $0x100] sm:$0xff] %vm2494, %v2336
  %2528 = vst.msk [vmem:[%s7 + $0x108] sm:$0xff] %vm2494, %v2341
  %2529 = vst.msk [vmem:[%s7 + $0x110] sm:$0xff] %vm2494, %v2346
  %2530 = vst.msk [vmem:[%s7 + $0x118] sm:$0xff] %vm2494, %v2351
  %2531 = vst.msk [vmem:[%s7 + $0x120] sm:$0xff] %vm2494, %v2356
  %2532 = vst.msk [vmem:[%s7 + $0x128] sm:$0xff] %vm2494, %v2361
  %2533 = vst.msk [vmem:[%s7 + $0x130] sm:$0xff] %vm2494, %v2366
  %2534 = vst.msk [vmem:[%s7 + $0x138] sm:$0xff] %vm2494, %v2371
  %2535 = vst.msk [vmem:[%s7 + $0x140] sm:$0xff] %vm2494, %v2376
  %2536 = vst.msk [vmem:[%s7 + $0x148] sm:$0xff] %vm2494, %v2381
  %2537 = vst.msk [vmem:[%s7 + $0x150] sm:$0xff] %vm2494, %v2386
  %2538 = vst.msk [vmem:[%s7 + $0x158] sm:$0xff] %vm2494, %v2391
  %2539 = vst.msk [vmem:[%s7 + $0x160] sm:$0xff] %vm2494, %v2396
  %2540 = vst.msk [vmem:[%s7 + $0x168] sm:$0xff] %vm2494, %v2401
  %2541 = vst.msk [vmem:[%s7 + $0x170] sm:$0xff] %vm2494, %v2406
  %2542 = vst.msk [vmem:[%s7 + $0x178] sm:$0xff] %vm2494, %v2411
  %2543 = vst.msk [vmem:[%s7 + $0x180] sm:$0xff] %vm2494, %v2416
  %2544 = vst.msk [vmem:[%s7 + $0x188] sm:$0xff] %vm2494, %v2421
  %2545 = vst.msk [vmem:[%s7 + $0x190] sm:$0xff] %vm2494, %v2426
  %2546 = vst.msk [vmem:[%s7 + $0x198] sm:$0xff] %vm2494, %v2431
  %2547 = vst.msk [vmem:[%s7 + $0x1a0] sm:$0xff] %vm2494, %v2436
  %2548 = vst.msk [vmem:[%s7 + $0x1a8] sm:$0xff] %vm2494, %v2441
  %2549 = vst.msk [vmem:[%s7 + $0x1b0] sm:$0xff] %vm2494, %v2446
  %2550 = vst.msk [vmem:[%s7 + $0x1b8] sm:$0xff] %vm2494, %v2451
  %2551 = vst.msk [vmem:[%s7 + $0x1c0] sm:$0xff] %vm2494, %v2456
  %2552 = vst.msk [vmem:[%s7 + $0x1c8] sm:$0xff] %vm2494, %v2461
  %2553 = vst.msk [vmem:[%s7 + $0x1d0] sm:$0xff] %vm2494, %v2466
  %2554 = vst.msk [vmem:[%s7 + $0x1d8] sm:$0xff] %vm2494, %v2471
  %2555 = vst.msk [vmem:[%s7 + $0x1e0] sm:$0xff] %vm2494, %v2476
  %2556 = vst.msk [vmem:[%s7 + $0x1e8] sm:$0xff] %vm2494, %v2481
  %2557 = vst.msk [vmem:[%s7 + $0x1f0] sm:$0xff] %vm2494, %v2486
  %2558 = vst.msk [vmem:[%s7 + $0x1f8] sm:$0xff] %vm2494, %v2491
  // Predicated region
  $region30: #{tpu_custom_call.1} parent=0 // pred_check
    _
  $region31: #{tpu_custom_call.1} parent=0 // pred_check_branch
    %2560 = sbr.rel (0) target = $region33
  $region32: #{tpu_custom_call.1} parent=0 // pred_region
    _
  $region33: #{tpu_custom_call.1} parent=0 // pred_fallthru
    _
  // Predicated region
  $region34: #{tpu_custom_call.1} parent=0 // pred_check
    _
  $region35: #{tpu_custom_call.1} parent=0 // pred_check_branch
    %2562 = sbr.rel (0) target = $region37
  $region36: #{tpu_custom_call.1} parent=0 // pred_region
    _
  $region37: #{tpu_custom_call.1} parent=0 // pred_fallthru
    _

</llo_original>
